<compile_context>
chip_gen: v7x
topology: tpu7x:2x2x1
jax: 0.10.0
libtpu: 0.0.40
codegen_flags: <defaults>
</compile_context>

<pallas_src>
import functools

import jax
import jax.numpy as jnp
from jax import lax
from jax.experimental import pallas as pl
from jax.experimental.pallas import tpu as pltpu

LANE = 128


def _round_up(v, m):
    return ((v + m - 1) // m) * m


def _full(shape):
    return pl.BlockSpec(shape, lambda: (0,) * len(shape))


def _pad_to(x, shape):
    return jnp.pad(x, [(0, t - s) for s, t in zip(x.shape, shape)])


# ----------------------------- in-kernel helpers ------------------------------


def _bn_train(x, gamma, beta, eps):
    # BatchNorm1d (training mode) over nodes (axis 0), biased variance.
    # Two-pass variance (no E[x^2]-mean^2 cancellation); affine folded into one FMA.
    # Kept entirely in f32 (v5e VPU/EUP have no bf16).
    inv_n = 1.0 / x.shape[0]
    mean = jnp.sum(x, axis=0, keepdims=True) * inv_n
    centered = x - mean
    var = jnp.sum(centered * centered, axis=0, keepdims=True) * inv_n
    scale = gamma * lax.rsqrt(var + eps)          # rsqrt -> EUP slot (free vs. MXU)
    return centered * scale + beta


# --------------------------------- kernel -------------------------------------


def _fused_forward_kernel(a_ref, x_ref, w1_ref, w2_ref, prm_ref, o_ref,
                          *, alpha, K, eps, hp, cp):
    n = a_ref.shape[0]

    # APPNP propagation matrix P = M_K built in-kernel (no extra launch, no HBM trip):
    #   M_0 = I,  M_{k+1} = (1 - alpha) * A_hat @ M_k + alpha * I
    # f32 chain: at n=32 this is a handful of MXU passes; preserves K=10 fidelity.
    rows = lax.broadcasted_iota(jnp.int32, (n, n), 0)
    cols = lax.broadcasted_iota(jnp.int32, (n, n), 1)
    eye = (rows == cols).astype(jnp.float32)
    a_scaled = (1.0 - alpha) * a_ref[...]          # hoisted loop invariants
    alpha_eye = alpha * eye
    p = eye
    for _ in range(K):                             # K=10, fully unrolled
        p = jnp.dot(a_scaled, p, preferred_element_type=jnp.float32) + alpha_eye
    p_bf = p.astype(jnp.bfloat16)                  # bf16 operand for the P @ h matmuls

    # Packed per-lane params: rows = [b1, bn1_g, bn1_b, b2, bn2_g, bn2_b] (pad lanes = 0).
    b1, g1, be1 = prm_ref[0:1, :hp], prm_ref[1:2, :hp], prm_ref[2:3, :hp]
    b2, g2, be2 = prm_ref[3:4, :cp], prm_ref[4:5, :cp], prm_ref[5:6, :cp]

    x_bf = x_ref[...].astype(jnp.bfloat16)
    w1_bf = w1_ref[...].astype(jnp.bfloat16)
    w2_bf = w2_ref[...].astype(jnp.bfloat16)

    # Stage 1: linear1 -> APPNP (single P @ h) -> BN + ReLU
    h = jnp.dot(x_bf, w1_bf, preferred_element_type=jnp.float32) + b1
    h = jnp.dot(p_bf, h.astype(jnp.bfloat16), preferred_element_type=jnp.float32)
    h = jnp.maximum(_bn_train(h, g1, be1, eps), 0.0)

    # Stage 2: linear2 -> APPNP -> BN
    h = jnp.dot(h.astype(jnp.bfloat16), w2_bf, preferred_element_type=jnp.float32) + b2
    h = jnp.dot(p_bf, h.astype(jnp.bfloat16), preferred_element_type=jnp.float32)
    o_ref[...] = _bn_train(h, g2, be2, eps).astype(o_ref.dtype)


# ------------------------------ JAX wrappers -----------------------------------


def build_normalized_adjacency(edge_index, num_nodes):
    # Glue (plain JAX): densify edge_index [2, E]; duplicate edges accumulate (.add),
    # add self loops, symmetric normalization A_hat = D^{-1/2} (A + I) D^{-1/2}.
    src, dst = edge_index[0], edge_index[1]
    a = jnp.zeros((num_nodes, num_nodes), jnp.float32)
    a = a.at[dst, src].add(1.0)                        # message flows src -> dst
    a = a + jnp.eye(num_nodes, dtype=jnp.float32)      # self loops
    deg = jnp.sum(a, axis=1)
    dinv = jnp.where(deg > 0, lax.rsqrt(deg), 0.0)
    return dinv[:, None] * a * dinv[None, :]


def _vmem_limit_bytes(io_bytes, intermediate_bytes):
    # Computed per-configuration instead of hard-coded: double-buffered I/O + in-kernel
    # intermediates + headroom, capped by the chip's VMEM capacity when queryable.
    try:
        cap = int(pltpu.get_tpu_info().vmem_capacity_bytes)
    except Exception:  # conservative fallback = smallest generation (v7x per-TC 64 MiB)
        cap = 64 << 20
    need = 2 * io_bytes + intermediate_bytes + (4 << 20)
    return int(min(max(need, 8 << 20), cap - (4 << 20)))


def appnp2simp_bn_forward(params, x, edge_index, *, alpha=0.1, K=10, eps=1e-5):
    n, f_in = x.shape
    hidden = params["w1"].shape[1]
    num_classes = params["w2"].shape[1]

    fp = _round_up(f_in, LANE)
    hp = _round_up(hidden, LANE)
    cp = _round_up(num_classes, LANE)
    pw = max(hp, cp)

    a_hat = build_normalized_adjacency(edge_index, n)

    # Zero-pad feature/lane dims to 128; padded lanes stay exactly zero through the
    # whole network (zero weights/biases/gamma/beta), so slicing at the end is exact.
    # Node rows are never padded (BN stats divide by the true node count n).
    xp = _pad_to(x, (n, fp))
    w1 = _pad_to(params["w1"], (fp, hp))
    w2 = _pad_to(params["w2"], (hp, cp))

    # Pack the six tiny per-lane parameter rows into one (8, pw) block -> single DMA.
    prm = jnp.zeros((8, pw), jnp.float32)
    prm = prm.at[0, :hidden].set(params["b1"])
    prm = prm.at[1, :hidden].set(params["bn1_g"])
    prm = prm.at[2, :hidden].set(params["bn1_b"])
    prm = prm.at[3, :num_classes].set(params["b2"])
    prm = prm.at[4, :num_classes].set(params["bn2_g"])
    prm = prm.at[5, :num_classes].set(params["bn2_b"])

    io_bytes = 4 * (a_hat.size + xp.size + w1.size + w2.size + prm.size + n * cp)
    inter_bytes = 4 * (2 * n * n + 2 * n * hp + 2 * n * cp)   # P chain + h stages
    vmem_limit = _vmem_limit_bytes(io_bytes, inter_bytes)

    out = pl.pallas_call(
        functools.partial(_fused_forward_kernel,
                          alpha=alpha, K=K, eps=eps, hp=hp, cp=cp),
        out_shape=jax.ShapeDtypeStruct((n, cp), x.dtype),
        in_specs=[
            _full((n, n)),        # A_hat
            _full((n, fp)),       # x
            _full((fp, hp)),      # w1
            _full((hp, cp)),      # w2
            _full((8, pw)),       # packed [b1, g1, be1, b2, g2, be2]
        ],
        out_specs=_full((n, cp)),
        compiler_params=pltpu.CompilerParams(vmem_limit_bytes=vmem_limit),
    )(a_hat, xp, w1, w2, prm)

    return out[:, :num_classes]


# ---------------------------------- main ----------------------------------------

if __name__ == "__main__":
    N = 32            # number of graph nodes
    IN_FEATURES = 16
    HIDDEN = 32
    NUM_CLASSES = 8
    E = 64            # number of edges
    ALPHA = 0.1
    K = 10            # APPNP uses K=10 regardless of ctor arg (per the module)

    key = jax.random.PRNGKey(0)
    kx, ke, kw1, kb1, kw2, kb2 = jax.random.split(key, 6)

    x = jax.random.normal(kx, (N, IN_FEATURES), jnp.float32)
    edge_index = jax.random.randint(ke, (2, E), 0, N, jnp.int32)

    # Deterministic parameter init (synthetic, matches nn.Linear / BatchNorm1d shapes).
    params = {
        "w1": jax.random.normal(kw1, (IN_FEATURES, HIDDEN), jnp.float32) * 0.1,
        "b1": jax.random.normal(kb1, (HIDDEN,), jnp.float32) * 0.01,
        "w2": jax.random.normal(kw2, (HIDDEN, NUM_CLASSES), jnp.float32) * 0.1,
        "b2": jax.random.normal(kb2, (NUM_CLASSES,), jnp.float32) * 0.01,
        "bn1_g": jnp.ones((HIDDEN,), jnp.float32),
        "bn1_b": jnp.zeros((HIDDEN,), jnp.float32),
        "bn2_g": jnp.ones((NUM_CLASSES,), jnp.float32),
        "bn2_b": jnp.zeros((NUM_CLASSES,), jnp.float32),
    }

    out = appnp2simp_bn_forward(params, x, edge_index, alpha=ALPHA, K=K)
    out = jax.block_until_ready(out)
    assert out.shape == (N, NUM_CLASSES)
    print("KERNEL_OK")
</pallas_src>

<mosaic_0001>
module attributes {stable_mosaic.version = 11 : i64} {
  func.func @_fused_forward_kernel(%arg0: memref<32x32xf32, #tpu.memory_space<vmem>>, %arg1: memref<32x128xf32, #tpu.memory_space<vmem>>, %arg2: memref<128x128xf32, #tpu.memory_space<vmem>>, %arg3: memref<128x128xf32, #tpu.memory_space<vmem>>, %arg4: memref<8x128xf32, #tpu.memory_space<vmem>>, %arg5: memref<32x128xf32, #tpu.memory_space<vmem>>) attributes {dimension_semantics = [], scalar_prefetch = 0 : i64, scratch_operands = 0 : i64, tpu.core_type = #tpu.core_type<tc>} {
    %0 = tpu.iota {dimensions = array<i32: 0>} : vector<32x32xi32>
    %1 = tpu.iota {dimensions = array<i32: 1>} : vector<32x32xi32>
    %2 = arith.cmpi eq, %0, %1 : vector<32x32xi32>
    %3 = arith.extui %2 : vector<32x32xi1> to vector<32x32xi32>
    %4 = arith.sitofp %3 : vector<32x32xi32> to vector<32x32xf32>
    %c0 = arith.constant 0 : index
    %c0_0 = arith.constant 0 : index
    %5 = vector.load %arg0[%c0, %c0_0] : memref<32x32xf32, #tpu.memory_space<vmem>>, vector<32x32xf32>
    %cst = arith.constant 0.899999976 : f32
    %6 = vector.broadcast %cst : f32 to vector<32x32xf32>
    %7 = arith.mulf %6, %5 : vector<32x32xf32>
    %cst_1 = arith.constant 1.000000e-01 : f32
    %8 = vector.broadcast %cst_1 : f32 to vector<32x32xf32>
    %9 = arith.mulf %8, %4 : vector<32x32xf32>
    %cst_2 = arith.constant dense<0.000000e+00> : vector<32x32xf32>
    %10 = tpu.matmul %7, %4, %cst_2 {dimension_numbers = #tpu.dot_dimension_numbers<[1], [0], [0], [1], [0, 0, 1, 1], [], []>} : vector<32x32xf32>, vector<32x32xf32>, vector<32x32xf32> -> vector<32x32xf32>
    %11 = arith.addf %10, %9 : vector<32x32xf32>
    %cst_3 = arith.constant dense<0.000000e+00> : vector<32x32xf32>
    %12 = tpu.matmul %7, %11, %cst_3 {dimension_numbers = #tpu.dot_dimension_numbers<[1], [0], [0], [1], [0, 0, 1, 1], [], []>} : vector<32x32xf32>, vector<32x32xf32>, vector<32x32xf32> -> vector<32x32xf32>
    %13 = arith.addf %12, %9 : vector<32x32xf32>
    %cst_4 = arith.constant dense<0.000000e+00> : vector<32x32xf32>
    %14 = tpu.matmul %7, %13, %cst_4 {dimension_numbers = #tpu.dot_dimension_numbers<[1], [0], [0], [1], [0, 0, 1, 1], [], []>} : vector<32x32xf32>, vector<32x32xf32>, vector<32x32xf32> -> vector<32x32xf32>
    %15 = arith.addf %14, %9 : vector<32x32xf32>
    %cst_5 = arith.constant dense<0.000000e+00> : vector<32x32xf32>
    %16 = tpu.matmul %7, %15, %cst_5 {dimension_numbers = #tpu.dot_dimension_numbers<[1], [0], [0], [1], [0, 0, 1, 1], [], []>} : vector<32x32xf32>, vector<32x32xf32>, vector<32x32xf32> -> vector<32x32xf32>
    %17 = arith.addf %16, %9 : vector<32x32xf32>
    %cst_6 = arith.constant dense<0.000000e+00> : vector<32x32xf32>
    %18 = tpu.matmul %7, %17, %cst_6 {dimension_numbers = #tpu.dot_dimension_numbers<[1], [0], [0], [1], [0, 0, 1, 1], [], []>} : vector<32x32xf32>, vector<32x32xf32>, vector<32x32xf32> -> vector<32x32xf32>
    %19 = arith.addf %18, %9 : vector<32x32xf32>
    %cst_7 = arith.constant dense<0.000000e+00> : vector<32x32xf32>
    %20 = tpu.matmul %7, %19, %cst_7 {dimension_numbers = #tpu.dot_dimension_numbers<[1], [0], [0], [1], [0, 0, 1, 1], [], []>} : vector<32x32xf32>, vector<32x32xf32>, vector<32x32xf32> -> vector<32x32xf32>
    %21 = arith.addf %20, %9 : vector<32x32xf32>
    %cst_8 = arith.constant dense<0.000000e+00> : vector<32x32xf32>
    %22 = tpu.matmul %7, %21, %cst_8 {dimension_numbers = #tpu.dot_dimension_numbers<[1], [0], [0], [1], [0, 0, 1, 1], [], []>} : vector<32x32xf32>, vector<32x32xf32>, vector<32x32xf32> -> vector<32x32xf32>
    %23 = arith.addf %22, %9 : vector<32x32xf32>
    %cst_9 = arith.constant dense<0.000000e+00> : vector<32x32xf32>
    %24 = tpu.matmul %7, %23, %cst_9 {dimension_numbers = #tpu.dot_dimension_numbers<[1], [0], [0], [1], [0, 0, 1, 1], [], []>} : vector<32x32xf32>, vector<32x32xf32>, vector<32x32xf32> -> vector<32x32xf32>
    %25 = arith.addf %24, %9 : vector<32x32xf32>
    %cst_10 = arith.constant dense<0.000000e+00> : vector<32x32xf32>
    %26 = tpu.matmul %7, %25, %cst_10 {dimension_numbers = #tpu.dot_dimension_numbers<[1], [0], [0], [1], [0, 0, 1, 1], [], []>} : vector<32x32xf32>, vector<32x32xf32>, vector<32x32xf32> -> vector<32x32xf32>
    %27 = arith.addf %26, %9 : vector<32x32xf32>
    %cst_11 = arith.constant dense<0.000000e+00> : vector<32x32xf32>
    %28 = tpu.matmul %7, %27, %cst_11 {dimension_numbers = #tpu.dot_dimension_numbers<[1], [0], [0], [1], [0, 0, 1, 1], [], []>} : vector<32x32xf32>, vector<32x32xf32>, vector<32x32xf32> -> vector<32x32xf32>
    %29 = arith.addf %28, %9 : vector<32x32xf32>
    %30 = arith.truncf %29 : vector<32x32xf32> to vector<32x32xbf16>
    %c0_12 = arith.constant 0 : index
    %c0_13 = arith.constant 0 : index
    %31 = vector.load %arg4[%c0_12, %c0_13] : memref<8x128xf32, #tpu.memory_space<vmem>>, vector<1x128xf32>
    %c1 = arith.constant 1 : index
    %c0_14 = arith.constant 0 : index
    %32 = vector.load %arg4[%c1, %c0_14] : memref<8x128xf32, #tpu.memory_space<vmem>>, vector<1x128xf32>
    %c2 = arith.constant 2 : index
    %c0_15 = arith.constant 0 : index
    %33 = vector.load %arg4[%c2, %c0_15] : memref<8x128xf32, #tpu.memory_space<vmem>>, vector<1x128xf32>
    %c3 = arith.constant 3 : index
    %c0_16 = arith.constant 0 : index
    %34 = vector.load %arg4[%c3, %c0_16] : memref<8x128xf32, #tpu.memory_space<vmem>>, vector<1x128xf32>
    %c4 = arith.constant 4 : index
    %c0_17 = arith.constant 0 : index
    %35 = vector.load %arg4[%c4, %c0_17] : memref<8x128xf32, #tpu.memory_space<vmem>>, vector<1x128xf32>
    %c5 = arith.constant 5 : index
    %c0_18 = arith.constant 0 : index
    %36 = vector.load %arg4[%c5, %c0_18] : memref<8x128xf32, #tpu.memory_space<vmem>>, vector<1x128xf32>
    %c0_19 = arith.constant 0 : index
    %c0_20 = arith.constant 0 : index
    %37 = vector.load %arg1[%c0_19, %c0_20] : memref<32x128xf32, #tpu.memory_space<vmem>>, vector<32x128xf32>
    %38 = arith.truncf %37 : vector<32x128xf32> to vector<32x128xbf16>
    %c0_21 = arith.constant 0 : index
    %c0_22 = arith.constant 0 : index
    %39 = vector.load %arg2[%c0_21, %c0_22] : memref<128x128xf32, #tpu.memory_space<vmem>>, vector<128x128xf32>
    %40 = arith.truncf %39 : vector<128x128xf32> to vector<128x128xbf16>
    %c0_23 = arith.constant 0 : index
    %c0_24 = arith.constant 0 : index
    %41 = vector.load %arg3[%c0_23, %c0_24] : memref<128x128xf32, #tpu.memory_space<vmem>>, vector<128x128xf32>
    %42 = arith.truncf %41 : vector<128x128xf32> to vector<128x128xbf16>
    %cst_25 = arith.constant dense<0.000000e+00> : vector<32x128xf32>
    %43 = tpu.matmul %38, %40, %cst_25 {dimension_numbers = #tpu.dot_dimension_numbers<[1], [0], [0], [1], [0, 0, 1, 1], [], []>} : vector<32x128xbf16>, vector<128x128xbf16>, vector<32x128xf32> -> vector<32x128xf32>
    %44 = vector.broadcast %31 : vector<1x128xf32> to vector<32x128xf32>
    %45 = arith.addf %43, %44 : vector<32x128xf32>
    %46 = arith.truncf %45 : vector<32x128xf32> to vector<32x128xbf16>
    %cst_26 = arith.constant dense<0.000000e+00> : vector<32x128xf32>
    %47 = tpu.matmul %30, %46, %cst_26 {dimension_numbers = #tpu.dot_dimension_numbers<[1], [0], [0], [1], [0, 0, 1, 1], [], []>} : vector<32x32xbf16>, vector<32x128xbf16>, vector<32x128xf32> -> vector<32x128xf32>
    %cst_27 = arith.constant dense<0.000000e+00> : vector<128xf32>
    %48 = vector.multi_reduction <add>, %47, %cst_27 [0] : vector<32x128xf32> to vector<128xf32>
    %49 = vector.shape_cast %48 : vector<128xf32> to vector<1x128xf32>
    %cst_28 = arith.constant 3.125000e-02 : f32
    %50 = vector.broadcast %cst_28 : f32 to vector<1x128xf32>
    %51 = arith.mulf %49, %50 : vector<1x128xf32>
    %52 = vector.broadcast %51 : vector<1x128xf32> to vector<32x128xf32>
    %53 = arith.subf %47, %52 : vector<32x128xf32>
    %54 = arith.mulf %53, %53 : vector<32x128xf32>
    %cst_29 = arith.constant dense<0.000000e+00> : vector<128xf32>
    %55 = vector.multi_reduction <add>, %54, %cst_29 [0] : vector<32x128xf32> to vector<128xf32>
    %56 = vector.shape_cast %55 : vector<128xf32> to vector<1x128xf32>
    %cst_30 = arith.constant 3.125000e-02 : f32
    %57 = vector.broadcast %cst_30 : f32 to vector<1x128xf32>
    %58 = arith.mulf %56, %57 : vector<1x128xf32>
    %cst_31 = arith.constant 9.99999974E-6 : f32
    %59 = vector.broadcast %cst_31 : f32 to vector<1x128xf32>
    %60 = arith.addf %58, %59 : vector<1x128xf32>
    %61 = math.rsqrt %60 : vector<1x128xf32>
    %62 = arith.mulf %32, %61 : vector<1x128xf32>
    %63 = vector.broadcast %62 : vector<1x128xf32> to vector<32x128xf32>
    %64 = arith.mulf %53, %63 : vector<32x128xf32>
    %65 = vector.broadcast %33 : vector<1x128xf32> to vector<32x128xf32>
    %66 = arith.addf %64, %65 : vector<32x128xf32>
    %cst_32 = arith.constant 0.000000e+00 : f32
    %67 = vector.broadcast %cst_32 : f32 to vector<32x128xf32>
    %68 = arith.maximumf %66, %67 : vector<32x128xf32>
    %69 = arith.truncf %68 : vector<32x128xf32> to vector<32x128xbf16>
    %cst_33 = arith.constant dense<0.000000e+00> : vector<32x128xf32>
    %70 = tpu.matmul %69, %42, %cst_33 {dimension_numbers = #tpu.dot_dimension_numbers<[1], [0], [0], [1], [0, 0, 1, 1], [], []>} : vector<32x128xbf16>, vector<128x128xbf16>, vector<32x128xf32> -> vector<32x128xf32>
    %71 = vector.broadcast %34 : vector<1x128xf32> to vector<32x128xf32>
    %72 = arith.addf %70, %71 : vector<32x128xf32>
    %73 = arith.truncf %72 : vector<32x128xf32> to vector<32x128xbf16>
    %cst_34 = arith.constant dense<0.000000e+00> : vector<32x128xf32>
    %74 = tpu.matmul %30, %73, %cst_34 {dimension_numbers = #tpu.dot_dimension_numbers<[1], [0], [0], [1], [0, 0, 1, 1], [], []>} : vector<32x32xbf16>, vector<32x128xbf16>, vector<32x128xf32> -> vector<32x128xf32>
    %cst_35 = arith.constant dense<0.000000e+00> : vector<128xf32>
    %75 = vector.multi_reduction <add>, %74, %cst_35 [0] : vector<32x128xf32> to vector<128xf32>
    %76 = vector.shape_cast %75 : vector<128xf32> to vector<1x128xf32>
    %cst_36 = arith.constant 3.125000e-02 : f32
    %77 = vector.broadcast %cst_36 : f32 to vector<1x128xf32>
    %78 = arith.mulf %76, %77 : vector<1x128xf32>
    %79 = vector.broadcast %78 : vector<1x128xf32> to vector<32x128xf32>
    %80 = arith.subf %74, %79 : vector<32x128xf32>
    %81 = arith.mulf %80, %80 : vector<32x128xf32>
    %cst_37 = arith.constant dense<0.000000e+00> : vector<128xf32>
    %82 = vector.multi_reduction <add>, %81, %cst_37 [0] : vector<32x128xf32> to vector<128xf32>
    %83 = vector.shape_cast %82 : vector<128xf32> to vector<1x128xf32>
    %cst_38 = arith.constant 3.125000e-02 : f32
    %84 = vector.broadcast %cst_38 : f32 to vector<1x128xf32>
    %85 = arith.mulf %83, %84 : vector<1x128xf32>
    %cst_39 = arith.constant 9.99999974E-6 : f32
    %86 = vector.broadcast %cst_39 : f32 to vector<1x128xf32>
    %87 = arith.addf %85, %86 : vector<1x128xf32>
    %88 = math.rsqrt %87 : vector<1x128xf32>
    %89 = arith.mulf %35, %88 : vector<1x128xf32>
    %90 = vector.broadcast %89 : vector<1x128xf32> to vector<32x128xf32>
    %91 = arith.mulf %80, %90 : vector<32x128xf32>
    %92 = vector.broadcast %36 : vector<1x128xf32> to vector<32x128xf32>
    %93 = arith.addf %91, %92 : vector<32x128xf32>
    %c0_40 = arith.constant 0 : index
    %c0_41 = arith.constant 0 : index
    %94 = vector.load %arg5[%c0_40, %c0_41] : memref<32x128xf32, #tpu.memory_space<vmem>>, vector<32x128xf32>
    tpu.vector_store %arg5[%c0_40, %c0_41], %93 {strides = array<i32>} : memref<32x128xf32, #tpu.memory_space<vmem>>, vector<32x128xf32>,
    return
  }
}

</mosaic_0001>

<llo_original>
// kernel: tpu_custom_call.1
$region0: #{tpu_custom_call.1}
  #allocation0 [shape = 'u32[]', space=smem, size = 0x4, offset = 0x4, fixed_abs, tag = 'smem constant byte address 0x4 - core index']
  #allocation1 [shape = 'u32[144,128]{1,0:T(1,128)}', space=vmem, size = 0x12000, scoped, tag = 'internal scratch']
  %s0 = inlined_call_operand.hbm [shape: f32[32,32], index: 0, kind: input, shape index: {}]
  %s1 = inlined_call_operand.hbm [shape: f32[32,128], index: 1, kind: input, shape index: {}]
  %s2 = inlined_call_operand.hbm [shape: f32[128,128], index: 2, kind: input, shape index: {}]
  %s3 = inlined_call_operand.hbm [shape: f32[128,128], index: 3, kind: input, shape index: {}]
  %s4 = inlined_call_operand.vmem [shape: f32[8,128], index: 4, kind: input, shape index: {}]
  %s5 = inlined_call_operand.hbm [shape: f32[32,128], index: 5, kind: output, shape index: {}]
  %s6 = sld [smem:[#allocation0]]
  $region46: #{tpu_custom_call.1} parent=0
    _
  %s8 = ssub.s32 1, %s6
  %s9 = scalar_select 0, %s8, %s6
  $region1: #{tpu_custom_call.1} parent=0
    #allocation2 [shape = 'u8[16384]{0}', space=vmem, size = 0x4000, scoped, tag = 'input window, operand 0, single buffered']
    #allocation3 [shape = 's32[1]{0}', space=sflag, size = 0x4, scoped, tag = 'scoped memory for tpu_custom_call.1']
    #allocation4 [shape = 's32[1]{0}', space=sflag, size = 0x4, scoped, tag = 'scoped memory for tpu_custom_call.1']
    #allocation5 [shape = 'u8[16384]{0}', space=vmem, size = 0x4000, scoped, tag = 'input window, operand 1, single buffered']
    #allocation6 [shape = 's32[1]{0}', space=sflag, size = 0x4, scoped, tag = 'scoped memory for tpu_custom_call.1']
    #allocation7 [shape = 'u8[65536]{0}', space=vmem, size = 0x10000, scoped, tag = 'input window, operand 2, single buffered']
    #allocation8 [shape = 'u8[65536]{0}', space=vmem, size = 0x10000, scoped, tag = 'input window, operand 3, single buffered']
    #allocation9 [shape = 's32[1]{0}', space=sflag, size = 0x4, scoped, tag = 'scoped memory for tpu_custom_call.1']
    #allocation10 [shape = 'u8[16384]{0}', space=vmem, size = 0x4000, scoped, tag = 'output window, operand 0, single buffered']
    %10 = vsyncpa [#allocation3], 0
    %11 = vsyncpa [#allocation6], 0
    %12 = vsyncpa [#allocation9], 0
    %13 = vsyncpa [#allocation4], 0
    // Predicated region
    $region2: #{tpu_custom_call.1} parent=1 // pred_check
      _
    $region3: #{tpu_custom_call.1} parent=1 // pred_check_branch
      %15 = sbr.rel (0) target = $region5
    $region4: #{tpu_custom_call.1} parent=1 // pred_region
      %s17 = ssub.s32 512, 512
      %18 = vsyncadd [#allocation3], %s17
      %s19 = sshll.u32 [#allocation2], 4
      %s20 = int_to_ptr.vmem [resolvable:$true] %s19
      %25 = dma.hbm_to_vmem [thread:$0]  %s0, 512, %s20, [#allocation3], 128, 128, 8
    $region5: #{tpu_custom_call.1} parent=1 // pred_fallthru
      _
    // Predicated region
    $region6: #{tpu_custom_call.1} parent=1 // pred_check
      _
    $region7: #{tpu_custom_call.1} parent=1 // pred_check_branch
      %27 = sbr.rel (0) target = $region9
    $region8: #{tpu_custom_call.1} parent=1 // pred_region
      %s29 = ssub.s32 512, 512
      %30 = vsyncadd [#allocation6], %s29
      %s31 = sshll.u32 [#allocation5], 4
      %s32 = int_to_ptr.vmem [resolvable:$true] %s31
      %37 = dma.hbm_to_vmem [thread:$0]  %s1, 512, %s32, [#allocation6], 128, 128, 8
    $region9: #{tpu_custom_call.1} parent=1 // pred_fallthru
      _
    // Predicated region
    $region10: #{tpu_custom_call.1} parent=1 // pred_check
      _
    $region11: #{tpu_custom_call.1} parent=1 // pred_check_branch
      %39 = sbr.rel (0) target = $region13
    $region12: #{tpu_custom_call.1} parent=1 // pred_region
      %s41 = ssub.s32 2048, 2048
      %42 = vsyncadd [#allocation6], %s41
      %s43 = sshll.u32 [#allocation7], 4
      %s44 = int_to_ptr.vmem [resolvable:$true] %s43
      %49 = dma.hbm_to_vmem [thread:$0]  %s2, 2048, %s44, [#allocation6], 128, 128, 8
    $region13: #{tpu_custom_call.1} parent=1 // pred_fallthru
      _
    // Predicated region
    $region14: #{tpu_custom_call.1} parent=1 // pred_check
      _
    $region15: #{tpu_custom_call.1} parent=1 // pred_check_branch
      %51 = sbr.rel (0) target = $region17
    $region16: #{tpu_custom_call.1} parent=1 // pred_region
      %s53 = ssub.s32 2048, 2048
      %54 = vsyncadd [#allocation9], %s53
      %s55 = sshll.u32 [#allocation8], 4
      %s56 = int_to_ptr.vmem [resolvable:$true] %s55
      %61 = dma.hbm_to_vmem [thread:$0]  %s3, 2048, %s56, [#allocation9], 128, 128, 8
    $region17: #{tpu_custom_call.1} parent=1 // pred_fallthru
      _
    // Predicated region
    $region18: #{tpu_custom_call.1} parent=1 // pred_check
      _
    $region19: #{tpu_custom_call.1} parent=1 // pred_check_branch
      %63 = sbr.rel (0) target = $region21
    $region20: #{tpu_custom_call.1} parent=1 // pred_region
      _
    $region21: #{tpu_custom_call.1} parent=1 // pred_fallthru
      _
    // Predicated region
    $region22: #{tpu_custom_call.1} parent=1 // pred_check
      _
    $region23: #{tpu_custom_call.1} parent=1 // pred_check_branch
      %65 = sbr.rel (0) target = $region25
    $region24: #{tpu_custom_call.1} parent=1 // pred_region
      %66 = dma.done [#allocation3], 512
    $region25: #{tpu_custom_call.1} parent=1 // pred_fallthru
      _
    // Predicated region
    $region26: #{tpu_custom_call.1} parent=1 // pred_check
      _
    $region27: #{tpu_custom_call.1} parent=1 // pred_check_branch
      %68 = sbr.rel (0) target = $region29
    $region28: #{tpu_custom_call.1} parent=1 // pred_region
      %69 = dma.done [#allocation6], 512
    $region29: #{tpu_custom_call.1} parent=1 // pred_fallthru
      _
    // Predicated region
    $region30: #{tpu_custom_call.1} parent=1 // pred_check
      _
    $region31: #{tpu_custom_call.1} parent=1 // pred_check_branch
      %71 = sbr.rel (0) target = $region33
    $region32: #{tpu_custom_call.1} parent=1 // pred_region
      %72 = dma.done [#allocation6], 2048
    $region33: #{tpu_custom_call.1} parent=1 // pred_fallthru
      _
    // Predicated region
    $region34: #{tpu_custom_call.1} parent=1 // pred_check
      _
    $region35: #{tpu_custom_call.1} parent=1 // pred_check_branch
      %74 = sbr.rel (0) target = $region37
    $region36: #{tpu_custom_call.1} parent=1 // pred_region
      %75 = dma.done [#allocation9], 2048
    $region37: #{tpu_custom_call.1} parent=1 // pred_fallthru
      _
    %v77 = vlaneseq
    %v78 = vshrl.u32 %v77, 7
    %v79 = vadd.s32 %v78, 8
    %v80 = vadd.s32 %v78, 16
    %v81 = vadd.s32 %v78, 24
    %v82 = vlaneseq
    %v83 = vand.u32 %v82, 127
    %vm84 = vcmp.eq.s32.totalorder %v78, %v83
    %vm85 = vcmp.eq.s32.totalorder %v79, %v83
    %vm86 = vcmp.eq.s32.totalorder %v80, %v83
    %vm87 = vcmp.eq.s32.totalorder %v81, %v83
    %v88 = vsel %vm84, 1, 0
    %v89 = vsel %vm85, 1, 0
    %v90 = vsel %vm86, 1, 0
    %v91 = vsel %vm87, 1, 0
    %v92 = vcvt.s32.f32 %v88
    %v93 = vcvt.s32.f32 %v89
    %v94 = vcvt.s32.f32 %v90
    %v95 = vcvt.s32.f32 %v91
    %v96 = vld [vmem:[#allocation2] sm:$0xff]
    %v97 = vld [vmem:[#allocation2 + $0x8] sm:$0xff]
    %v98 = vld [vmem:[#allocation2 + $0x10] sm:$0xff]
    %v99 = vld [vmem:[#allocation2 + $0x18] sm:$0xff]
    %v100 = vmul.f32 %v96, 0.9
    %v101 = vmul.f32 %v97, 0.9
    %v102 = vmul.f32 %v98, 0.9
    %v103 = vmul.f32 %v99, 0.9
    %v104 = vmul.f32 %v92, 0.1
    %v105 = vmul.f32 %v93, 0.1
    %v106 = vmul.f32 %v94, 0.1
    %v107 = vmul.f32 %v95, 0.1
    %vm108 = vcmask 261120
    %v110 = vsel %vm108, %v100, 0
    %v113 = vsel %vm108, %v101, 0
    %v116 = vsel %vm108, %v102, 0
    %v119 = vsel %vm108, %v103, 0
    %121 = vmatprep.subr.mxu0 0.0
    %122 = vmatpush1.msra.mxu0 %v92
    %123 = vmatprep.subr.mxu0 0.0
    %124 = vmatpush1.msra.mxu0 %v93
    %125 = vmatprep.subr.mxu0 0.0
    %126 = vmatpush1.msra.mxu0 %v94
    %127 = vmatprep.subr.mxu0 0.0
    %128 = vmatpush1.msra.mxu0 %v95
    %129 = vmatprep.subr.mxu0 0.0
    %130 = vmatpush1.msra.mxu0 0.0
    %131 = vmatprep.subr.mxu0 0.0
    %132 = vmatpush1.msra.mxu0 0.0
    %133 = vmatprep.subr.mxu0 0.0
    %134 = vmatpush1.msra.mxu0 0.0
    %135 = vmatprep.subr.mxu0 0.0
    %136 = vmatpush1.msra.mxu0 0.0
    %137 = vmatprep.subr.mxu0 0.0
    %138 = vmatpush1.msra.mxu0 0.0
    %139 = vmatprep.subr.mxu0 0.0
    %140 = vmatpush1.msra.mxu0 0.0
    %141 = vmatprep.subr.mxu0 0.0
    %142 = vmatpush1.msra.mxu0 0.0
    %143 = vmatprep.subr.mxu0 0.0
    %144 = vmatpush1.msra.mxu0 0.0
    %145 = vmatprep.subr.mxu0 0.0
    %146 = vmatpush1.msra.mxu0 0.0
    %147 = vmatprep.subr.mxu0 0.0
    %148 = vmatpush1.msra.mxu0 0.0
    %149 = vmatprep.subr.mxu0 0.0
    %150 = vmatpush1.msra.mxu0 0.0
    %151 = vmatprep.subr.mxu0 0.0
    %152 = vmatpush1.msra.mxu0 0.0
    %153 = vmatprep.subr.mxu0 0.0
    %154 = vmatpush1.msra.mxu0 0.0
    %155 = vmatprep.subr.mxu0 0.0
    %156 = vmatpush1.msra.mxu0 0.0
    %157 = vmatprep.subr.mxu0 0.0
    %158 = vmatpush1.msra.mxu0 0.0
    %159 = vmatprep.subr.mxu0 0.0
    %160 = vmatpush1.msra.mxu0 0.0
    %161 = vmatprep.subr.mxu0 0.0
    %162 = vmatpush1.msra.mxu0 0.0
    %163 = vmatprep.subr.mxu0 0.0
    %164 = vmatpush1.msra.mxu0 0.0
    %165 = vmatprep.subr.mxu0 0.0
    %166 = vmatpush1.msra.mxu0 0.0
    %167 = vmatprep.subr.mxu0 0.0
    %168 = vmatpush1.msra.mxu0 0.0
    %169 = vmatprep.subr.mxu0 0.0
    %170 = vmatpush1.msra.mxu0 0.0
    %171 = vmatprep.subr.mxu0 0.0
    %172 = vmatpush1.msra.mxu0 0.0
    %173 = vmatprep.subr.mxu0 0.0
    %174 = vmatpush1.msra.mxu0 0.0
    %175 = vmatprep.subr.mxu0 0.0
    %176 = vmatpush1.msra.mxu0 0.0
    %177 = vmatprep.subr.mxu0 0.0
    %178 = vmatpush1.msra.mxu0 0.0
    %179 = vmatprep.subr.mxu0 0.0
    %180 = vmatpush1.msra.mxu0 0.0
    %181 = vmatprep.subr.mxu0 0.0
    %182 = vmatpush1.msra.mxu0 0.0
    %183 = vmatprep.subr.mxu0 0.0
    %184 = vmatpush1.msra.mxu0 0.0
    %185 = vmatprep.mubr.f32.mxu0 0.0
    %186 = vmatmul.mubr.f32.gmra.mrb[0].mxu0 %v110
    %v187 = vpop.f32.mrb[0].mxu0
    %v188 = vadd.f32 %v104, %v187
    %v189 = vpop.f32.mrb[0].mxu0
    %190 = vmatprep.mubr.f32.mxu0 0.0
    %191 = vmatmul.mubr.f32.gmra.mrb[0].mxu0 %v113
    %v192 = vpop.f32.mrb[0].mxu0
    %v193 = vadd.f32 %v105, %v192
    %v194 = vpop.f32.mrb[0].mxu0
    %195 = vmatprep.mubr.f32.mxu0 0.0
    %196 = vmatmul.mubr.f32.gmra.mrb[0].mxu0 %v116
    %v197 = vpop.f32.mrb[0].mxu0
    %v198 = vadd.f32 %v106, %v197
    %v199 = vpop.f32.mrb[0].mxu0
    %200 = vmatprep.mubr.f32.mxu0 0.0
    %201 = vmatmul.mubr.f32.gmra.mrb[0].mxu0 %v119
    %v202 = vpop.f32.mrb[0].mxu0
    %v203 = vadd.f32 %v107, %v202
    %v204 = vpop.f32.mrb[0].mxu0
    %205 = vdwg.mxu0
    %206 = vmatprep.subr.mxu0 0.0
    %207 = vmatpush1.msra.mxu0 %v188
    %208 = vmatprep.subr.mxu0 0.0
    %209 = vmatpush1.msra.mxu0 %v193
    %210 = vmatprep.subr.mxu0 0.0
    %211 = vmatpush1.msra.mxu0 %v198
    %212 = vmatprep.subr.mxu0 0.0
    %213 = vmatpush1.msra.mxu0 %v203
    %214 = vmatprep.subr.mxu0 0.0
    %215 = vmatpush1.msra.mxu0 0.0
    %216 = vmatprep.subr.mxu0 0.0
    %217 = vmatpush1.msra.mxu0 0.0
    %218 = vmatprep.subr.mxu0 0.0
    %219 = vmatpush1.msra.mxu0 0.0
    %220 = vmatprep.subr.mxu0 0.0
    %221 = vmatpush1.msra.mxu0 0.0
    %222 = vmatprep.subr.mxu0 0.0
    %223 = vmatpush1.msra.mxu0 0.0
    %224 = vmatprep.subr.mxu0 0.0
    %225 = vmatpush1.msra.mxu0 0.0
    %226 = vmatprep.subr.mxu0 0.0
    %227 = vmatpush1.msra.mxu0 0.0
    %228 = vmatprep.subr.mxu0 0.0
    %229 = vmatpush1.msra.mxu0 0.0
    %230 = vmatprep.subr.mxu0 0.0
    %231 = vmatpush1.msra.mxu0 0.0
    %232 = vmatprep.subr.mxu0 0.0
    %233 = vmatpush1.msra.mxu0 0.0
    %234 = vmatprep.subr.mxu0 0.0
    %235 = vmatpush1.msra.mxu0 0.0
    %236 = vmatprep.subr.mxu0 0.0
    %237 = vmatpush1.msra.mxu0 0.0
    %238 = vmatprep.subr.mxu0 0.0
    %239 = vmatpush1.msra.mxu0 0.0
    %240 = vmatprep.subr.mxu0 0.0
    %241 = vmatpush1.msra.mxu0 0.0
    %242 = vmatprep.subr.mxu0 0.0
    %243 = vmatpush1.msra.mxu0 0.0
    %244 = vmatprep.subr.mxu0 0.0
    %245 = vmatpush1.msra.mxu0 0.0
    %246 = vmatprep.subr.mxu0 0.0
    %247 = vmatpush1.msra.mxu0 0.0
    %248 = vmatprep.subr.mxu0 0.0
    %249 = vmatpush1.msra.mxu0 0.0
    %250 = vmatprep.subr.mxu0 0.0
    %251 = vmatpush1.msra.mxu0 0.0
    %252 = vmatprep.subr.mxu0 0.0
    %253 = vmatpush1.msra.mxu0 0.0
    %254 = vmatprep.subr.mxu0 0.0
    %255 = vmatpush1.msra.mxu0 0.0
    %256 = vmatprep.subr.mxu0 0.0
    %257 = vmatpush1.msra.mxu0 0.0
    %258 = vmatprep.subr.mxu0 0.0
    %259 = vmatpush1.msra.mxu0 0.0
    %260 = vmatprep.subr.mxu0 0.0
    %261 = vmatpush1.msra.mxu0 0.0
    %262 = vmatprep.subr.mxu0 0.0
    %263 = vmatpush1.msra.mxu0 0.0
    %264 = vmatprep.subr.mxu0 0.0
    %265 = vmatpush1.msra.mxu0 0.0
    %266 = vmatprep.subr.mxu0 0.0
    %267 = vmatpush1.msra.mxu0 0.0
    %268 = vmatprep.subr.mxu0 0.0
    %269 = vmatpush1.msra.mxu0 0.0
    %270 = vmatprep.mubr.f32.mxu0 0.0
    %271 = vmatmul.mubr.f32.gmra.mrb[0].mxu0 %v110
    %v272 = vpop.f32.mrb[0].mxu0
    %v273 = vadd.f32 %v104, %v272
    %v274 = vpop.f32.mrb[0].mxu0
    %275 = vmatprep.mubr.f32.mxu0 0.0
    %276 = vmatmul.mubr.f32.gmra.mrb[0].mxu0 %v113
    %v277 = vpop.f32.mrb[0].mxu0
    %v278 = vadd.f32 %v105, %v277
    %v279 = vpop.f32.mrb[0].mxu0
    %280 = vmatprep.mubr.f32.mxu0 0.0
    %281 = vmatmul.mubr.f32.gmra.mrb[0].mxu0 %v116
    %v282 = vpop.f32.mrb[0].mxu0
    %v283 = vadd.f32 %v106, %v282
    %v284 = vpop.f32.mrb[0].mxu0
    %285 = vmatprep.mubr.f32.mxu0 0.0
    %286 = vmatmul.mubr.f32.gmra.mrb[0].mxu0 %v119
    %v287 = vpop.f32.mrb[0].mxu0
    %v288 = vadd.f32 %v107, %v287
    %v289 = vpop.f32.mrb[0].mxu0
    %290 = vdwg.mxu0
    %291 = vmatprep.subr.mxu0 0.0
    %292 = vmatpush1.msra.mxu0 %v273
    %293 = vmatprep.subr.mxu0 0.0
    %294 = vmatpush1.msra.mxu0 %v278
    %295 = vmatprep.subr.mxu0 0.0
    %296 = vmatpush1.msra.mxu0 %v283
    %297 = vmatprep.subr.mxu0 0.0
    %298 = vmatpush1.msra.mxu0 %v288
    %299 = vmatprep.subr.mxu0 0.0
    %300 = vmatpush1.msra.mxu0 0.0
    %301 = vmatprep.subr.mxu0 0.0
    %302 = vmatpush1.msra.mxu0 0.0
    %303 = vmatprep.subr.mxu0 0.0
    %304 = vmatpush1.msra.mxu0 0.0
    %305 = vmatprep.subr.mxu0 0.0
    %306 = vmatpush1.msra.mxu0 0.0
    %307 = vmatprep.subr.mxu0 0.0
    %308 = vmatpush1.msra.mxu0 0.0
    %309 = vmatprep.subr.mxu0 0.0
    %310 = vmatpush1.msra.mxu0 0.0
    %311 = vmatprep.subr.mxu0 0.0
    %312 = vmatpush1.msra.mxu0 0.0
    %313 = vmatprep.subr.mxu0 0.0
    %314 = vmatpush1.msra.mxu0 0.0
    %315 = vmatprep.subr.mxu0 0.0
    %316 = vmatpush1.msra.mxu0 0.0
    %317 = vmatprep.subr.mxu0 0.0
    %318 = vmatpush1.msra.mxu0 0.0
    %319 = vmatprep.subr.mxu0 0.0
    %320 = vmatpush1.msra.mxu0 0.0
    %321 = vmatprep.subr.mxu0 0.0
    %322 = vmatpush1.msra.mxu0 0.0
    %323 = vmatprep.subr.mxu0 0.0
    %324 = vmatpush1.msra.mxu0 0.0
    %325 = vmatprep.subr.mxu0 0.0
    %326 = vmatpush1.msra.mxu0 0.0
    %327 = vmatprep.subr.mxu0 0.0
    %328 = vmatpush1.msra.mxu0 0.0
    %329 = vmatprep.subr.mxu0 0.0
    %330 = vmatpush1.msra.mxu0 0.0
    %331 = vmatprep.subr.mxu0 0.0
    %332 = vmatpush1.msra.mxu0 0.0
    %333 = vmatprep.subr.mxu0 0.0
    %334 = vmatpush1.msra.mxu0 0.0
    %335 = vmatprep.subr.mxu0 0.0
    %336 = vmatpush1.msra.mxu0 0.0
    %337 = vmatprep.subr.mxu0 0.0
    %338 = vmatpush1.msra.mxu0 0.0
    %339 = vmatprep.subr.mxu0 0.0
    %340 = vmatpush1.msra.mxu0 0.0
    %341 = vmatprep.subr.mxu0 0.0
    %342 = vmatpush1.msra.mxu0 0.0
    %343 = vmatprep.subr.mxu0 0.0
    %344 = vmatpush1.msra.mxu0 0.0
    %345 = vmatprep.subr.mxu0 0.0
    %346 = vmatpush1.msra.mxu0 0.0
    %347 = vmatprep.subr.mxu0 0.0
    %348 = vmatpush1.msra.mxu0 0.0
    %349 = vmatprep.subr.mxu0 0.0
    %350 = vmatpush1.msra.mxu0 0.0
    %351 = vmatprep.subr.mxu0 0.0
    %352 = vmatpush1.msra.mxu0 0.0
    %353 = vmatprep.subr.mxu0 0.0
    %354 = vmatpush1.msra.mxu0 0.0
    %355 = vmatprep.mubr.f32.mxu0 0.0
    %356 = vmatmul.mubr.f32.gmra.mrb[0].mxu0 %v110
    %v357 = vpop.f32.mrb[0].mxu0
    %v358 = vadd.f32 %v104, %v357
    %v359 = vpop.f32.mrb[0].mxu0
    %360 = vmatprep.mubr.f32.mxu0 0.0
    %361 = vmatmul.mubr.f32.gmra.mrb[0].mxu0 %v113
    %v362 = vpop.f32.mrb[0].mxu0
    %v363 = vadd.f32 %v105, %v362
    %v364 = vpop.f32.mrb[0].mxu0
    %365 = vmatprep.mubr.f32.mxu0 0.0
    %366 = vmatmul.mubr.f32.gmra.mrb[0].mxu0 %v116
    %v367 = vpop.f32.mrb[0].mxu0
    %v368 = vadd.f32 %v106, %v367
    %v369 = vpop.f32.mrb[0].mxu0
    %370 = vmatprep.mubr.f32.mxu0 0.0
    %371 = vmatmul.mubr.f32.gmra.mrb[0].mxu0 %v119
    %v372 = vpop.f32.mrb[0].mxu0
    %v373 = vadd.f32 %v107, %v372
    %v374 = vpop.f32.mrb[0].mxu0
    %375 = vdwg.mxu0
    %376 = vmatprep.subr.mxu0 0.0
    %377 = vmatpush1.msra.mxu0 %v358
    %378 = vmatprep.subr.mxu0 0.0
    %379 = vmatpush1.msra.mxu0 %v363
    %380 = vmatprep.subr.mxu0 0.0
    %381 = vmatpush1.msra.mxu0 %v368
    %382 = vmatprep.subr.mxu0 0.0
    %383 = vmatpush1.msra.mxu0 %v373
    %384 = vmatprep.subr.mxu0 0.0
    %385 = vmatpush1.msra.mxu0 0.0
    %386 = vmatprep.subr.mxu0 0.0
    %387 = vmatpush1.msra.mxu0 0.0
    %388 = vmatprep.subr.mxu0 0.0
    %389 = vmatpush1.msra.mxu0 0.0
    %390 = vmatprep.subr.mxu0 0.0
    %391 = vmatpush1.msra.mxu0 0.0
    %392 = vmatprep.subr.mxu0 0.0
    %393 = vmatpush1.msra.mxu0 0.0
    %394 = vmatprep.subr.mxu0 0.0
    %395 = vmatpush1.msra.mxu0 0.0
    %396 = vmatprep.subr.mxu0 0.0
    %397 = vmatpush1.msra.mxu0 0.0
    %398 = vmatprep.subr.mxu0 0.0
    %399 = vmatpush1.msra.mxu0 0.0
    %400 = vmatprep.subr.mxu0 0.0
    %401 = vmatpush1.msra.mxu0 0.0
    %402 = vmatprep.subr.mxu0 0.0
    %403 = vmatpush1.msra.mxu0 0.0
    %404 = vmatprep.subr.mxu0 0.0
    %405 = vmatpush1.msra.mxu0 0.0
    %406 = vmatprep.subr.mxu0 0.0
    %407 = vmatpush1.msra.mxu0 0.0
    %408 = vmatprep.subr.mxu0 0.0
    %409 = vmatpush1.msra.mxu0 0.0
    %410 = vmatprep.subr.mxu0 0.0
    %411 = vmatpush1.msra.mxu0 0.0
    %412 = vmatprep.subr.mxu0 0.0
    %413 = vmatpush1.msra.mxu0 0.0
    %414 = vmatprep.subr.mxu0 0.0
    %415 = vmatpush1.msra.mxu0 0.0
    %416 = vmatprep.subr.mxu0 0.0
    %417 = vmatpush1.msra.mxu0 0.0
    %418 = vmatprep.subr.mxu0 0.0
    %419 = vmatpush1.msra.mxu0 0.0
    %420 = vmatprep.subr.mxu0 0.0
    %421 = vmatpush1.msra.mxu0 0.0
    %422 = vmatprep.subr.mxu0 0.0
    %423 = vmatpush1.msra.mxu0 0.0
    %424 = vmatprep.subr.mxu0 0.0
    %425 = vmatpush1.msra.mxu0 0.0
    %426 = vmatprep.subr.mxu0 0.0
    %427 = vmatpush1.msra.mxu0 0.0
    %428 = vmatprep.subr.mxu0 0.0
    %429 = vmatpush1.msra.mxu0 0.0
    %430 = vmatprep.subr.mxu0 0.0
    %431 = vmatpush1.msra.mxu0 0.0
    %432 = vmatprep.subr.mxu0 0.0
    %433 = vmatpush1.msra.mxu0 0.0
    %434 = vmatprep.subr.mxu0 0.0
    %435 = vmatpush1.msra.mxu0 0.0
    %436 = vmatprep.subr.mxu0 0.0
    %437 = vmatpush1.msra.mxu0 0.0
    %438 = vmatprep.subr.mxu0 0.0
    %439 = vmatpush1.msra.mxu0 0.0
    %440 = vmatprep.mubr.f32.mxu0 0.0
    %441 = vmatmul.mubr.f32.gmra.mrb[0].mxu0 %v110
    %v442 = vpop.f32.mrb[0].mxu0
    %v443 = vadd.f32 %v104, %v442
    %v444 = vpop.f32.mrb[0].mxu0
    %445 = vmatprep.mubr.f32.mxu0 0.0
    %446 = vmatmul.mubr.f32.gmra.mrb[0].mxu0 %v113
    %v447 = vpop.f32.mrb[0].mxu0
    %v448 = vadd.f32 %v105, %v447
    %v449 = vpop.f32.mrb[0].mxu0
    %450 = vmatprep.mubr.f32.mxu0 0.0
    %451 = vmatmul.mubr.f32.gmra.mrb[0].mxu0 %v116
    %v452 = vpop.f32.mrb[0].mxu0
    %v453 = vadd.f32 %v106, %v452
    %v454 = vpop.f32.mrb[0].mxu0
    %455 = vmatprep.mubr.f32.mxu0 0.0
    %456 = vmatmul.mubr.f32.gmra.mrb[0].mxu0 %v119
    %v457 = vpop.f32.mrb[0].mxu0
    %v458 = vadd.f32 %v107, %v457
    %v459 = vpop.f32.mrb[0].mxu0
    %460 = vdwg.mxu0
    %461 = vmatprep.subr.mxu0 0.0
    %462 = vmatpush1.msra.mxu0 %v443
    %463 = vmatprep.subr.mxu0 0.0
    %464 = vmatpush1.msra.mxu0 %v448
    %465 = vmatprep.subr.mxu0 0.0
    %466 = vmatpush1.msra.mxu0 %v453
    %467 = vmatprep.subr.mxu0 0.0
    %468 = vmatpush1.msra.mxu0 %v458
    %469 = vmatprep.subr.mxu0 0.0
    %470 = vmatpush1.msra.mxu0 0.0
    %471 = vmatprep.subr.mxu0 0.0
    %472 = vmatpush1.msra.mxu0 0.0
    %473 = vmatprep.subr.mxu0 0.0
    %474 = vmatpush1.msra.mxu0 0.0
    %475 = vmatprep.subr.mxu0 0.0
    %476 = vmatpush1.msra.mxu0 0.0
    %477 = vmatprep.subr.mxu0 0.0
    %478 = vmatpush1.msra.mxu0 0.0
    %479 = vmatprep.subr.mxu0 0.0
    %480 = vmatpush1.msra.mxu0 0.0
    %481 = vmatprep.subr.mxu0 0.0
    %482 = vmatpush1.msra.mxu0 0.0
    %483 = vmatprep.subr.mxu0 0.0
    %484 = vmatpush1.msra.mxu0 0.0
    %485 = vmatprep.subr.mxu0 0.0
    %486 = vmatpush1.msra.mxu0 0.0
    %487 = vmatprep.subr.mxu0 0.0
    %488 = vmatpush1.msra.mxu0 0.0
    %489 = vmatprep.subr.mxu0 0.0
    %490 = vmatpush1.msra.mxu0 0.0
    %491 = vmatprep.subr.mxu0 0.0
    %492 = vmatpush1.msra.mxu0 0.0
    %493 = vmatprep.subr.mxu0 0.0
    %494 = vmatpush1.msra.mxu0 0.0
    %495 = vmatprep.subr.mxu0 0.0
    %496 = vmatpush1.msra.mxu0 0.0
    %497 = vmatprep.subr.mxu0 0.0
    %498 = vmatpush1.msra.mxu0 0.0
    %499 = vmatprep.subr.mxu0 0.0
    %500 = vmatpush1.msra.mxu0 0.0
    %501 = vmatprep.subr.mxu0 0.0
    %502 = vmatpush1.msra.mxu0 0.0
    %503 = vmatprep.subr.mxu0 0.0
    %504 = vmatpush1.msra.mxu0 0.0
    %505 = vmatprep.subr.mxu0 0.0
    %506 = vmatpush1.msra.mxu0 0.0
    %507 = vmatprep.subr.mxu0 0.0
    %508 = vmatpush1.msra.mxu0 0.0
    %509 = vmatprep.subr.mxu0 0.0
    %510 = vmatpush1.msra.mxu0 0.0
    %511 = vmatprep.subr.mxu0 0.0
    %512 = vmatpush1.msra.mxu0 0.0
    %513 = vmatprep.subr.mxu0 0.0
    %514 = vmatpush1.msra.mxu0 0.0
    %515 = vmatprep.subr.mxu0 0.0
    %516 = vmatpush1.msra.mxu0 0.0
    %517 = vmatprep.subr.mxu0 0.0
    %518 = vmatpush1.msra.mxu0 0.0
    %519 = vmatprep.subr.mxu0 0.0
    %520 = vmatpush1.msra.mxu0 0.0
    %521 = vmatprep.subr.mxu0 0.0
    %522 = vmatpush1.msra.mxu0 0.0
    %523 = vmatprep.subr.mxu0 0.0
    %524 = vmatpush1.msra.mxu0 0.0
    %525 = vmatprep.mubr.f32.mxu0 0.0
    %526 = vmatmul.mubr.f32.gmra.mrb[0].mxu0 %v110
    %v527 = vpop.f32.mrb[0].mxu0
    %v528 = vadd.f32 %v104, %v527
    %v529 = vpop.f32.mrb[0].mxu0
    %530 = vmatprep.mubr.f32.mxu0 0.0
    %531 = vmatmul.mubr.f32.gmra.mrb[0].mxu0 %v113
    %v532 = vpop.f32.mrb[0].mxu0
    %v533 = vadd.f32 %v105, %v532
    %v534 = vpop.f32.mrb[0].mxu0
    %535 = vmatprep.mubr.f32.mxu0 0.0
    %536 = vmatmul.mubr.f32.gmra.mrb[0].mxu0 %v116
    %v537 = vpop.f32.mrb[0].mxu0
    %v538 = vadd.f32 %v106, %v537
    %v539 = vpop.f32.mrb[0].mxu0
    %540 = vmatprep.mubr.f32.mxu0 0.0
    %541 = vmatmul.mubr.f32.gmra.mrb[0].mxu0 %v119
    %v542 = vpop.f32.mrb[0].mxu0
    %v543 = vadd.f32 %v107, %v542
    %v544 = vpop.f32.mrb[0].mxu0
    %545 = vdwg.mxu0
    %546 = vmatprep.subr.mxu0 0.0
    %547 = vmatpush1.msra.mxu0 %v528
    %548 = vmatprep.subr.mxu0 0.0
    %549 = vmatpush1.msra.mxu0 %v533
    %550 = vmatprep.subr.mxu0 0.0
    %551 = vmatpush1.msra.mxu0 %v538
    %552 = vmatprep.subr.mxu0 0.0
    %553 = vmatpush1.msra.mxu0 %v543
    %554 = vmatprep.subr.mxu0 0.0
    %555 = vmatpush1.msra.mxu0 0.0
    %556 = vmatprep.subr.mxu0 0.0
    %557 = vmatpush1.msra.mxu0 0.0
    %558 = vmatprep.subr.mxu0 0.0
    %559 = vmatpush1.msra.mxu0 0.0
    %560 = vmatprep.subr.mxu0 0.0
    %561 = vmatpush1.msra.mxu0 0.0
    %562 = vmatprep.subr.mxu0 0.0
    %563 = vmatpush1.msra.mxu0 0.0
    %564 = vmatprep.subr.mxu0 0.0
    %565 = vmatpush1.msra.mxu0 0.0
    %566 = vmatprep.subr.mxu0 0.0
    %567 = vmatpush1.msra.mxu0 0.0
    %568 = vmatprep.subr.mxu0 0.0
    %569 = vmatpush1.msra.mxu0 0.0
    %570 = vmatprep.subr.mxu0 0.0
    %571 = vmatpush1.msra.mxu0 0.0
    %572 = vmatprep.subr.mxu0 0.0
    %573 = vmatpush1.msra.mxu0 0.0
    %574 = vmatprep.subr.mxu0 0.0
    %575 = vmatpush1.msra.mxu0 0.0
    %576 = vmatprep.subr.mxu0 0.0
    %577 = vmatpush1.msra.mxu0 0.0
    %578 = vmatprep.subr.mxu0 0.0
    %579 = vmatpush1.msra.mxu0 0.0
    %580 = vmatprep.subr.mxu0 0.0
    %581 = vmatpush1.msra.mxu0 0.0
    %582 = vmatprep.subr.mxu0 0.0
    %583 = vmatpush1.msra.mxu0 0.0
    %584 = vmatprep.subr.mxu0 0.0
    %585 = vmatpush1.msra.mxu0 0.0
    %586 = vmatprep.subr.mxu0 0.0
    %587 = vmatpush1.msra.mxu0 0.0
    %588 = vmatprep.subr.mxu0 0.0
    %589 = vmatpush1.msra.mxu0 0.0
    %590 = vmatprep.subr.mxu0 0.0
    %591 = vmatpush1.msra.mxu0 0.0
    %592 = vmatprep.subr.mxu0 0.0
    %593 = vmatpush1.msra.mxu0 0.0
    %594 = vmatprep.subr.mxu0 0.0
    %595 = vmatpush1.msra.mxu0 0.0
    %596 = vmatprep.subr.mxu0 0.0
    %597 = vmatpush1.msra.mxu0 0.0
    %598 = vmatprep.subr.mxu0 0.0
    %599 = vmatpush1.msra.mxu0 0.0
    %600 = vmatprep.subr.mxu0 0.0
    %601 = vmatpush1.msra.mxu0 0.0
    %602 = vmatprep.subr.mxu0 0.0
    %603 = vmatpush1.msra.mxu0 0.0
    %604 = vmatprep.subr.mxu0 0.0
    %605 = vmatpush1.msra.mxu0 0.0
    %606 = vmatprep.subr.mxu0 0.0
    %607 = vmatpush1.msra.mxu0 0.0
    %608 = vmatprep.subr.mxu0 0.0
    %609 = vmatpush1.msra.mxu0 0.0
    %610 = vmatprep.mubr.f32.mxu0 0.0
    %611 = vmatmul.mubr.f32.gmra.mrb[0].mxu0 %v110
    %v612 = vpop.f32.mrb[0].mxu0
    %v613 = vadd.f32 %v104, %v612
    %v614 = vpop.f32.mrb[0].mxu0
    %615 = vmatprep.mubr.f32.mxu0 0.0
    %616 = vmatmul.mubr.f32.gmra.mrb[0].mxu0 %v113
    %v617 = vpop.f32.mrb[0].mxu0
    %v618 = vadd.f32 %v105, %v617
    %v619 = vpop.f32.mrb[0].mxu0
    %620 = vmatprep.mubr.f32.mxu0 0.0
    %621 = vmatmul.mubr.f32.gmra.mrb[0].mxu0 %v116
    %v622 = vpop.f32.mrb[0].mxu0
    %v623 = vadd.f32 %v106, %v622
    %v624 = vpop.f32.mrb[0].mxu0
    %625 = vmatprep.mubr.f32.mxu0 0.0
    %626 = vmatmul.mubr.f32.gmra.mrb[0].mxu0 %v119
    %v627 = vpop.f32.mrb[0].mxu0
    %v628 = vadd.f32 %v107, %v627
    %v629 = vpop.f32.mrb[0].mxu0
    %630 = vdwg.mxu0
    %631 = vmatprep.subr.mxu0 0.0
    %632 = vmatpush1.msra.mxu0 %v613
    %633 = vmatprep.subr.mxu0 0.0
    %634 = vmatpush1.msra.mxu0 %v618
    %635 = vmatprep.subr.mxu0 0.0
    %636 = vmatpush1.msra.mxu0 %v623
    %637 = vmatprep.subr.mxu0 0.0
    %638 = vmatpush1.msra.mxu0 %v628
    %639 = vmatprep.subr.mxu0 0.0
    %640 = vmatpush1.msra.mxu0 0.0
    %641 = vmatprep.subr.mxu0 0.0
    %642 = vmatpush1.msra.mxu0 0.0
    %643 = vmatprep.subr.mxu0 0.0
    %644 = vmatpush1.msra.mxu0 0.0
    %645 = vmatprep.subr.mxu0 0.0
    %646 = vmatpush1.msra.mxu0 0.0
    %647 = vmatprep.subr.mxu0 0.0
    %648 = vmatpush1.msra.mxu0 0.0
    %649 = vmatprep.subr.mxu0 0.0
    %650 = vmatpush1.msra.mxu0 0.0
    %651 = vmatprep.subr.mxu0 0.0
    %652 = vmatpush1.msra.mxu0 0.0
    %653 = vmatprep.subr.mxu0 0.0
    %654 = vmatpush1.msra.mxu0 0.0
    %655 = vmatprep.subr.mxu0 0.0
    %656 = vmatpush1.msra.mxu0 0.0
    %657 = vmatprep.subr.mxu0 0.0
    %658 = vmatpush1.msra.mxu0 0.0
    %659 = vmatprep.subr.mxu0 0.0
    %660 = vmatpush1.msra.mxu0 0.0
    %661 = vmatprep.subr.mxu0 0.0
    %662 = vmatpush1.msra.mxu0 0.0
    %663 = vmatprep.subr.mxu0 0.0
    %664 = vmatpush1.msra.mxu0 0.0
    %665 = vmatprep.subr.mxu0 0.0
    %666 = vmatpush1.msra.mxu0 0.0
    %667 = vmatprep.subr.mxu0 0.0
    %668 = vmatpush1.msra.mxu0 0.0
    %669 = vmatprep.subr.mxu0 0.0
    %670 = vmatpush1.msra.mxu0 0.0
    %671 = vmatprep.subr.mxu0 0.0
    %672 = vmatpush1.msra.mxu0 0.0
    %673 = vmatprep.subr.mxu0 0.0
    %674 = vmatpush1.msra.mxu0 0.0
    %675 = vmatprep.subr.mxu0 0.0
    %676 = vmatpush1.msra.mxu0 0.0
    %677 = vmatprep.subr.mxu0 0.0
    %678 = vmatpush1.msra.mxu0 0.0
    %679 = vmatprep.subr.mxu0 0.0
    %680 = vmatpush1.msra.mxu0 0.0
    %681 = vmatprep.subr.mxu0 0.0
    %682 = vmatpush1.msra.mxu0 0.0
    %683 = vmatprep.subr.mxu0 0.0
    %684 = vmatpush1.msra.mxu0 0.0
    %685 = vmatprep.subr.mxu0 0.0
    %686 = vmatpush1.msra.mxu0 0.0
    %687 = vmatprep.subr.mxu0 0.0
    %688 = vmatpush1.msra.mxu0 0.0
    %689 = vmatprep.subr.mxu0 0.0
    %690 = vmatpush1.msra.mxu0 0.0
    %691 = vmatprep.subr.mxu0 0.0
    %692 = vmatpush1.msra.mxu0 0.0
    %693 = vmatprep.subr.mxu0 0.0
    %694 = vmatpush1.msra.mxu0 0.0
    %695 = vmatprep.mubr.f32.mxu0 0.0
    %696 = vmatmul.mubr.f32.gmra.mrb[0].mxu0 %v110
    %v697 = vpop.f32.mrb[0].mxu0
    %v698 = vadd.f32 %v104, %v697
    %v699 = vpop.f32.mrb[0].mxu0
    %700 = vmatprep.mubr.f32.mxu0 0.0
    %701 = vmatmul.mubr.f32.gmra.mrb[0].mxu0 %v113
    %v702 = vpop.f32.mrb[0].mxu0
    %v703 = vadd.f32 %v105, %v702
    %v704 = vpop.f32.mrb[0].mxu0
    %705 = vmatprep.mubr.f32.mxu0 0.0
    %706 = vmatmul.mubr.f32.gmra.mrb[0].mxu0 %v116
    %v707 = vpop.f32.mrb[0].mxu0
    %v708 = vadd.f32 %v106, %v707
    %v709 = vpop.f32.mrb[0].mxu0
    %710 = vmatprep.mubr.f32.mxu0 0.0
    %711 = vmatmul.mubr.f32.gmra.mrb[0].mxu0 %v119
    %v712 = vpop.f32.mrb[0].mxu0
    %v713 = vadd.f32 %v107, %v712
    %v714 = vpop.f32.mrb[0].mxu0
    %715 = vdwg.mxu0
    %716 = vmatprep.subr.mxu0 0.0
    %717 = vmatpush1.msra.mxu0 %v698
    %718 = vmatprep.subr.mxu0 0.0
    %719 = vmatpush1.msra.mxu0 %v703
    %720 = vmatprep.subr.mxu0 0.0
    %721 = vmatpush1.msra.mxu0 %v708
    %722 = vmatprep.subr.mxu0 0.0
    %723 = vmatpush1.msra.mxu0 %v713
    %724 = vmatprep.subr.mxu0 0.0
    %725 = vmatpush1.msra.mxu0 0.0
    %726 = vmatprep.subr.mxu0 0.0
    %727 = vmatpush1.msra.mxu0 0.0
    %728 = vmatprep.subr.mxu0 0.0
    %729 = vmatpush1.msra.mxu0 0.0
    %730 = vmatprep.subr.mxu0 0.0
    %731 = vmatpush1.msra.mxu0 0.0
    %732 = vmatprep.subr.mxu0 0.0
    %733 = vmatpush1.msra.mxu0 0.0
    %734 = vmatprep.subr.mxu0 0.0
    %735 = vmatpush1.msra.mxu0 0.0
    %736 = vmatprep.subr.mxu0 0.0
    %737 = vmatpush1.msra.mxu0 0.0
    %738 = vmatprep.subr.mxu0 0.0
    %739 = vmatpush1.msra.mxu0 0.0
    %740 = vmatprep.subr.mxu0 0.0
    %741 = vmatpush1.msra.mxu0 0.0
    %742 = vmatprep.subr.mxu0 0.0
    %743 = vmatpush1.msra.mxu0 0.0
    %744 = vmatprep.subr.mxu0 0.0
    %745 = vmatpush1.msra.mxu0 0.0
    %746 = vmatprep.subr.mxu0 0.0
    %747 = vmatpush1.msra.mxu0 0.0
    %748 = vmatprep.subr.mxu0 0.0
    %749 = vmatpush1.msra.mxu0 0.0
    %750 = vmatprep.subr.mxu0 0.0
    %751 = vmatpush1.msra.mxu0 0.0
    %752 = vmatprep.subr.mxu0 0.0
    %753 = vmatpush1.msra.mxu0 0.0
    %754 = vmatprep.subr.mxu0 0.0
    %755 = vmatpush1.msra.mxu0 0.0
    %756 = vmatprep.subr.mxu0 0.0
    %757 = vmatpush1.msra.mxu0 0.0
    %758 = vmatprep.subr.mxu0 0.0
    %759 = vmatpush1.msra.mxu0 0.0
    %760 = vmatprep.subr.mxu0 0.0
    %761 = vmatpush1.msra.mxu0 0.0
    %762 = vmatprep.subr.mxu0 0.0
    %763 = vmatpush1.msra.mxu0 0.0
    %764 = vmatprep.subr.mxu0 0.0
    %765 = vmatpush1.msra.mxu0 0.0
    %766 = vmatprep.subr.mxu0 0.0
    %767 = vmatpush1.msra.mxu0 0.0
    %768 = vmatprep.subr.mxu0 0.0
    %769 = vmatpush1.msra.mxu0 0.0
    %770 = vmatprep.subr.mxu0 0.0
    %771 = vmatpush1.msra.mxu0 0.0
    %772 = vmatprep.subr.mxu0 0.0
    %773 = vmatpush1.msra.mxu0 0.0
    %774 = vmatprep.subr.mxu0 0.0
    %775 = vmatpush1.msra.mxu0 0.0
    %776 = vmatprep.subr.mxu0 0.0
    %777 = vmatpush1.msra.mxu0 0.0
    %778 = vmatprep.subr.mxu0 0.0
    %779 = vmatpush1.msra.mxu0 0.0
    %780 = vmatprep.mubr.f32.mxu0 0.0
    %781 = vmatmul.mubr.f32.gmra.mrb[0].mxu0 %v110
    %v782 = vpop.f32.mrb[0].mxu0
    %v783 = vadd.f32 %v104, %v782
    %v784 = vpop.f32.mrb[0].mxu0
    %785 = vmatprep.mubr.f32.mxu0 0.0
    %786 = vmatmul.mubr.f32.gmra.mrb[0].mxu0 %v113
    %v787 = vpop.f32.mrb[0].mxu0
    %v788 = vadd.f32 %v105, %v787
    %v789 = vpop.f32.mrb[0].mxu0
    %790 = vmatprep.mubr.f32.mxu0 0.0
    %791 = vmatmul.mubr.f32.gmra.mrb[0].mxu0 %v116
    %v792 = vpop.f32.mrb[0].mxu0
    %v793 = vadd.f32 %v106, %v792
    %v794 = vpop.f32.mrb[0].mxu0
    %795 = vmatprep.mubr.f32.mxu0 0.0
    %796 = vmatmul.mubr.f32.gmra.mrb[0].mxu0 %v119
    %v797 = vpop.f32.mrb[0].mxu0
    %v798 = vadd.f32 %v107, %v797
    %v799 = vpop.f32.mrb[0].mxu0
    %800 = vdwg.mxu0
    %801 = vmatprep.subr.mxu0 0.0
    %802 = vmatpush1.msra.mxu0 %v783
    %803 = vmatprep.subr.mxu0 0.0
    %804 = vmatpush1.msra.mxu0 %v788
    %805 = vmatprep.subr.mxu0 0.0
    %806 = vmatpush1.msra.mxu0 %v793
    %807 = vmatprep.subr.mxu0 0.0
    %808 = vmatpush1.msra.mxu0 %v798
    %809 = vmatprep.subr.mxu0 0.0
    %810 = vmatpush1.msra.mxu0 0.0
    %811 = vmatprep.subr.mxu0 0.0
    %812 = vmatpush1.msra.mxu0 0.0
    %813 = vmatprep.subr.mxu0 0.0
    %814 = vmatpush1.msra.mxu0 0.0
    %815 = vmatprep.subr.mxu0 0.0
    %816 = vmatpush1.msra.mxu0 0.0
    %817 = vmatprep.subr.mxu0 0.0
    %818 = vmatpush1.msra.mxu0 0.0
    %819 = vmatprep.subr.mxu0 0.0
    %820 = vmatpush1.msra.mxu0 0.0
    %821 = vmatprep.subr.mxu0 0.0
    %822 = vmatpush1.msra.mxu0 0.0
    %823 = vmatprep.subr.mxu0 0.0
    %824 = vmatpush1.msra.mxu0 0.0
    %825 = vmatprep.subr.mxu0 0.0
    %826 = vmatpush1.msra.mxu0 0.0
    %827 = vmatprep.subr.mxu0 0.0
    %828 = vmatpush1.msra.mxu0 0.0
    %829 = vmatprep.subr.mxu0 0.0
    %830 = vmatpush1.msra.mxu0 0.0
    %831 = vmatprep.subr.mxu0 0.0
    %832 = vmatpush1.msra.mxu0 0.0
    %833 = vmatprep.subr.mxu0 0.0
    %834 = vmatpush1.msra.mxu0 0.0
    %835 = vmatprep.subr.mxu0 0.0
    %836 = vmatpush1.msra.mxu0 0.0
    %837 = vmatprep.subr.mxu0 0.0
    %838 = vmatpush1.msra.mxu0 0.0
    %839 = vmatprep.subr.mxu0 0.0
    %840 = vmatpush1.msra.mxu0 0.0
    %841 = vmatprep.subr.mxu0 0.0
    %842 = vmatpush1.msra.mxu0 0.0
    %843 = vmatprep.subr.mxu0 0.0
    %844 = vmatpush1.msra.mxu0 0.0
    %845 = vmatprep.subr.mxu0 0.0
    %846 = vmatpush1.msra.mxu0 0.0
    %847 = vmatprep.subr.mxu0 0.0
    %848 = vmatpush1.msra.mxu0 0.0
    %849 = vmatprep.subr.mxu0 0.0
    %850 = vmatpush1.msra.mxu0 0.0
    %851 = vmatprep.subr.mxu0 0.0
    %852 = vmatpush1.msra.mxu0 0.0
    %853 = vmatprep.subr.mxu0 0.0
    %854 = vmatpush1.msra.mxu0 0.0
    %855 = vmatprep.subr.mxu0 0.0
    %856 = vmatpush1.msra.mxu0 0.0
    %857 = vmatprep.subr.mxu0 0.0
    %858 = vmatpush1.msra.mxu0 0.0
    %859 = vmatprep.subr.mxu0 0.0
    %860 = vmatpush1.msra.mxu0 0.0
    %861 = vmatprep.subr.mxu0 0.0
    %862 = vmatpush1.msra.mxu0 0.0
    %863 = vmatprep.subr.mxu0 0.0
    %864 = vmatpush1.msra.mxu0 0.0
    %865 = vmatprep.mubr.f32.mxu0 0.0
    %866 = vmatmul.mubr.f32.gmra.mrb[0].mxu0 %v110
    %v867 = vpop.f32.mrb[0].mxu0
    %v868 = vadd.f32 %v104, %v867
    %v869 = vpop.f32.mrb[0].mxu0
    %870 = vmatprep.mubr.f32.mxu0 0.0
    %871 = vmatmul.mubr.f32.gmra.mrb[0].mxu0 %v113
    %v872 = vpop.f32.mrb[0].mxu0
    %v873 = vadd.f32 %v105, %v872
    %v874 = vpop.f32.mrb[0].mxu0
    %875 = vmatprep.mubr.f32.mxu0 0.0
    %876 = vmatmul.mubr.f32.gmra.mrb[0].mxu0 %v116
    %v877 = vpop.f32.mrb[0].mxu0
    %v878 = vadd.f32 %v106, %v877
    %v879 = vpop.f32.mrb[0].mxu0
    %880 = vmatprep.mubr.f32.mxu0 0.0
    %881 = vmatmul.mubr.f32.gmra.mrb[0].mxu0 %v119
    %v882 = vpop.f32.mrb[0].mxu0
    %v883 = vadd.f32 %v107, %v882
    %v884 = vpop.f32.mrb[0].mxu0
    %885 = vdwg.mxu0
    %886 = vmatprep.subr.mxu0 0.0
    %887 = vmatpush1.msra.mxu0 %v868
    %888 = vmatprep.subr.mxu0 0.0
    %889 = vmatpush1.msra.mxu0 %v873
    %890 = vmatprep.subr.mxu0 0.0
    %891 = vmatpush1.msra.mxu0 %v878
    %892 = vmatprep.subr.mxu0 0.0
    %893 = vmatpush1.msra.mxu0 %v883
    %894 = vmatprep.subr.mxu0 0.0
    %895 = vmatpush1.msra.mxu0 0.0
    %896 = vmatprep.subr.mxu0 0.0
    %897 = vmatpush1.msra.mxu0 0.0
    %898 = vmatprep.subr.mxu0 0.0
    %899 = vmatpush1.msra.mxu0 0.0
    %900 = vmatprep.subr.mxu0 0.0
    %901 = vmatpush1.msra.mxu0 0.0
    %902 = vmatprep.subr.mxu0 0.0
    %903 = vmatpush1.msra.mxu0 0.0
    %904 = vmatprep.subr.mxu0 0.0
    %905 = vmatpush1.msra.mxu0 0.0
    %906 = vmatprep.subr.mxu0 0.0
    %907 = vmatpush1.msra.mxu0 0.0
    %908 = vmatprep.subr.mxu0 0.0
    %909 = vmatpush1.msra.mxu0 0.0
    %910 = vmatprep.subr.mxu0 0.0
    %911 = vmatpush1.msra.mxu0 0.0
    %912 = vmatprep.subr.mxu0 0.0
    %913 = vmatpush1.msra.mxu0 0.0
    %914 = vmatprep.subr.mxu0 0.0
    %915 = vmatpush1.msra.mxu0 0.0
    %916 = vmatprep.subr.mxu0 0.0
    %917 = vmatpush1.msra.mxu0 0.0
    %918 = vmatprep.subr.mxu0 0.0
    %919 = vmatpush1.msra.mxu0 0.0
    %920 = vmatprep.subr.mxu0 0.0
    %921 = vmatpush1.msra.mxu0 0.0
    %922 = vmatprep.subr.mxu0 0.0
    %923 = vmatpush1.msra.mxu0 0.0
    %924 = vmatprep.subr.mxu0 0.0
    %925 = vmatpush1.msra.mxu0 0.0
    %926 = vmatprep.subr.mxu0 0.0
    %927 = vmatpush1.msra.mxu0 0.0
    %928 = vmatprep.subr.mxu0 0.0
    %929 = vmatpush1.msra.mxu0 0.0
    %930 = vmatprep.subr.mxu0 0.0
    %931 = vmatpush1.msra.mxu0 0.0
    %932 = vmatprep.subr.mxu0 0.0
    %933 = vmatpush1.msra.mxu0 0.0
    %934 = vmatprep.subr.mxu0 0.0
    %935 = vmatpush1.msra.mxu0 0.0
    %936 = vmatprep.subr.mxu0 0.0
    %937 = vmatpush1.msra.mxu0 0.0
    %938 = vmatprep.subr.mxu0 0.0
    %939 = vmatpush1.msra.mxu0 0.0
    %940 = vmatprep.subr.mxu0 0.0
    %941 = vmatpush1.msra.mxu0 0.0
    %942 = vmatprep.subr.mxu0 0.0
    %943 = vmatpush1.msra.mxu0 0.0
    %944 = vmatprep.subr.mxu0 0.0
    %945 = vmatpush1.msra.mxu0 0.0
    %946 = vmatprep.subr.mxu0 0.0
    %947 = vmatpush1.msra.mxu0 0.0
    %948 = vmatprep.subr.mxu0 0.0
    %949 = vmatpush1.msra.mxu0 0.0
    %950 = vmatprep.mubr.f32.mxu0 0.0
    %951 = vmatmul.mubr.f32.gmra.mrb[0].mxu0 %v110
    %v952 = vpop.f32.mrb[0].mxu0
    %v953 = vadd.f32 %v104, %v952
    %v954 = vpop.f32.mrb[0].mxu0
    %955 = vmatprep.mubr.f32.mxu0 0.0
    %956 = vmatmul.mubr.f32.gmra.mrb[0].mxu0 %v113
    %v957 = vpop.f32.mrb[0].mxu0
    %v958 = vadd.f32 %v105, %v957
    %v959 = vpop.f32.mrb[0].mxu0
    %960 = vmatprep.mubr.f32.mxu0 0.0
    %961 = vmatmul.mubr.f32.gmra.mrb[0].mxu0 %v116
    %v962 = vpop.f32.mrb[0].mxu0
    %v963 = vadd.f32 %v106, %v962
    %v964 = vpop.f32.mrb[0].mxu0
    %965 = vmatprep.mubr.f32.mxu0 0.0
    %966 = vmatmul.mubr.f32.gmra.mrb[0].mxu0 %v119
    %v967 = vpop.f32.mrb[0].mxu0
    %v968 = vadd.f32 %v107, %v967
    %v969 = vpop.f32.mrb[0].mxu0
    %970 = vdwg.mxu0
    %v971 = vpack.c.bf16 %v958, %v953
    %v972 = vpack.c.bf16 %v968, %v963
    %v973 = vld [vmem:[%s4] sm:$0x1]
    %v974 = vld [vmem:[%s4 + $0x1] sm:$0x1]
    %v975 = vld [vmem:[%s4 + $0x2] sm:$0x1]
    %v976 = vld [vmem:[%s4 + $0x3] sm:$0x1]
    %v977 = vld [vmem:[%s4 + $0x4] sm:$0x1]
    %v978 = vld [vmem:[%s4 + $0x5] sm:$0x1]
    %v979 = vld [vmem:[#allocation5] sm:$0xff]
    %v980 = vld [vmem:[#allocation5 + $0x8] sm:$0xff]
    %v981 = vld [vmem:[#allocation5 + $0x10] sm:$0xff]
    %v982 = vld [vmem:[#allocation5 + $0x18] sm:$0xff]
    %v983 = vpack.c.bf16 %v980, %v979
    %v984 = vpack.c.bf16 %v982, %v981
    %v985 = vld [vmem:[#allocation7] sm:$0xff]
    %v986 = vld [vmem:[#allocation7 + $0x8] sm:$0xff]
    %v987 = vld [vmem:[#allocation7 + $0x10] sm:$0xff]
    %v988 = vld [vmem:[#allocation7 + $0x18] sm:$0xff]
    %v989 = vld [vmem:[#allocation7 + $0x20] sm:$0xff]
    %v990 = vld [vmem:[#allocation7 + $0x28] sm:$0xff]
    %v991 = vld [vmem:[#allocation7 + $0x30] sm:$0xff]
    %v992 = vld [vmem:[#allocation7 + $0x38] sm:$0xff]
    %v993 = vld [vmem:[#allocation7 + $0x40] sm:$0xff]
    %v994 = vld [vmem:[#allocation7 + $0x48] sm:$0xff]
    %v995 = vld [vmem:[#allocation7 + $0x50] sm:$0xff]
    %v996 = vld [vmem:[#allocation7 + $0x58] sm:$0xff]
    %v997 = vld [vmem:[#allocation7 + $0x60] sm:$0xff]
    %v998 = vld [vmem:[#allocation7 + $0x68] sm:$0xff]
    %v999 = vld [vmem:[#allocation7 + $0x70] sm:$0xff]
    %v1000 = vld [vmem:[#allocation7 + $0x78] sm:$0xff]
    %v1001 = vpack.c.bf16 %v986, %v985
    %v1002 = vpack.c.bf16 %v988, %v987
    %v1003 = vpack.c.bf16 %v990, %v989
    %v1004 = vpack.c.bf16 %v992, %v991
    %v1005 = vpack.c.bf16 %v994, %v993
    %v1006 = vpack.c.bf16 %v996, %v995
    %v1007 = vpack.c.bf16 %v998, %v997
    %v1008 = vpack.c.bf16 %v1000, %v999
    %v1009 = vld [vmem:[#allocation8] sm:$0xff]
    %v1010 = vld [vmem:[#allocation8 + $0x8] sm:$0xff]
    %v1011 = vld [vmem:[#allocation8 + $0x10] sm:$0xff]
    %v1012 = vld [vmem:[#allocation8 + $0x18] sm:$0xff]
    %v1013 = vld [vmem:[#allocation8 + $0x20] sm:$0xff]
    %v1014 = vld [vmem:[#allocation8 + $0x28] sm:$0xff]
    %v1015 = vld [vmem:[#allocation8 + $0x30] sm:$0xff]
    %v1016 = vld [vmem:[#allocation8 + $0x38] sm:$0xff]
    %v1017 = vld [vmem:[#allocation8 + $0x40] sm:$0xff]
    %v1018 = vld [vmem:[#allocation8 + $0x48] sm:$0xff]
    %v1019 = vld [vmem:[#allocation8 + $0x50] sm:$0xff]
    %v1020 = vld [vmem:[#allocation8 + $0x58] sm:$0xff]
    %v1021 = vld [vmem:[#allocation8 + $0x60] sm:$0xff]
    %v1022 = vld [vmem:[#allocation8 + $0x68] sm:$0xff]
    %v1023 = vld [vmem:[#allocation8 + $0x70] sm:$0xff]
    %v1024 = vld [vmem:[#allocation8 + $0x78] sm:$0xff]
    %v1025 = vpack.c.bf16 %v1010, %v1009
    %v1026 = vpack.c.bf16 %v1012, %v1011
    %v1027 = vpack.c.bf16 %v1014, %v1013
    %v1028 = vpack.c.bf16 %v1016, %v1015
    %v1029 = vpack.c.bf16 %v1018, %v1017
    %v1030 = vpack.c.bf16 %v1020, %v1019
    %v1031 = vpack.c.bf16 %v1022, %v1021
    %v1032 = vpack.c.bf16 %v1024, %v1023
    %v1033 = vlaneseq
    %v1034 = vshrl.u32 %v1033, 7
    %v1035 = vsub.s32 0, %v1034
    %v1036 = vrot.slane %v973, %v1035
    %1037 = vmatprep.subr.bf16.mxu0 0
    %1038 = vmatpush1.bf16.msra.mxu0 %v1001
    %1039 = vmatprep.subr.bf16.mxu0 0
    %1040 = vmatpush1.bf16.msra.mxu0 %v1002
    %1041 = vmatprep.subr.bf16.mxu0 0
    %1042 = vmatpush1.bf16.msra.mxu0 %v1003
    %1043 = vmatprep.subr.bf16.mxu0 0
    %1044 = vmatpush1.bf16.msra.mxu0 %v1004
    %1045 = vmatprep.subr.bf16.mxu0 0
    %1046 = vmatpush1.bf16.msra.mxu0 %v1005
    %1047 = vmatprep.subr.bf16.mxu0 0
    %1048 = vmatpush1.bf16.msra.mxu0 %v1006
    %1049 = vmatprep.subr.bf16.mxu0 0
    %1050 = vmatpush1.bf16.msra.mxu0 %v1007
    %1051 = vmatprep.subr.bf16.mxu0 0
    %1052 = vmatpush1.bf16.msra.mxu0 %v1008
    %1053 = vmatprep.subr.bf16.mxu0 0
    %1054 = vmatpush1.bf16.msra.mxu0 0
    %1055 = vmatprep.subr.bf16.mxu0 0
    %1056 = vmatpush1.bf16.msra.mxu0 0
    %1057 = vmatprep.subr.bf16.mxu0 0
    %1058 = vmatpush1.bf16.msra.mxu0 0
    %1059 = vmatprep.subr.bf16.mxu0 0
    %1060 = vmatpush1.bf16.msra.mxu0 0
    %1061 = vmatprep.subr.bf16.mxu0 0
    %1062 = vmatpush1.bf16.msra.mxu0 0
    %1063 = vmatprep.subr.bf16.mxu0 0
    %1064 = vmatpush1.bf16.msra.mxu0 0
    %1065 = vmatprep.subr.bf16.mxu0 0
    %1066 = vmatpush1.bf16.msra.mxu0 0
    %1067 = vmatprep.subr.bf16.mxu0 0
    %1068 = vmatpush1.bf16.msra.mxu0 0
    %1069 = vmatprep.mubr.bf16.mxu0 0
    %1070 = vmatmul.mubr.bf16.gmra.mrb[0].mxu0 %v983
    %v1071 = vpop.f32.mrb[0].mxu0
    %v1072 = vadd.f32 %v1036, %v1071
    %v1073 = vpop.f32.mrb[0].mxu0
    %v1074 = vpop.f32.mrb[0].mxu0
    %v1075 = vadd.f32 %v1036, %v1074
    %v1076 = vpop.f32.mrb[0].mxu0
    %1077 = vmatprep.mubr.bf16.mxu0 0
    %1078 = vmatmul.mubr.bf16.gmra.mrb[0].mxu0 %v984
    %v1079 = vpop.f32.mrb[0].mxu0
    %v1080 = vadd.f32 %v1036, %v1079
    %v1081 = vpop.f32.mrb[0].mxu0
    %v1082 = vpop.f32.mrb[0].mxu0
    %v1083 = vadd.f32 %v1036, %v1082
    %v1084 = vpop.f32.mrb[0].mxu0
    %1085 = vdwg.mxu0
    %v1086 = vpack.c.bf16 %v1075, %v1072
    %v1087 = vpack.c.bf16 %v1083, %v1080
    %v1089 = vsel %vm108, %v971, 0
    %v1092 = vsel %vm108, %v972, 0
    %1094 = vmatprep.subr.bf16.mxu0 0
    %1095 = vmatpush1.bf16.msra.mxu0 %v1086
    %1096 = vmatprep.subr.bf16.mxu0 0
    %1097 = vmatpush1.bf16.msra.mxu0 %v1087
    %1098 = vmatprep.subr.bf16.mxu0 0
    %1099 = vmatpush1.bf16.msra.mxu0 0
    %1100 = vmatprep.subr.bf16.mxu0 0
    %1101 = vmatpush1.bf16.msra.mxu0 0
    %1102 = vmatprep.subr.bf16.mxu0 0
    %1103 = vmatpush1.bf16.msra.mxu0 0
    %1104 = vmatprep.subr.bf16.mxu0 0
    %1105 = vmatpush1.bf16.msra.mxu0 0
    %1106 = vmatprep.subr.bf16.mxu0 0
    %1107 = vmatpush1.bf16.msra.mxu0 0
    %1108 = vmatprep.subr.bf16.mxu0 0
    %1109 = vmatpush1.bf16.msra.mxu0 0
    %1110 = vmatprep.subr.bf16.mxu0 0
    %1111 = vmatpush1.bf16.msra.mxu0 0
    %1112 = vmatprep.subr.bf16.mxu0 0
    %1113 = vmatpush1.bf16.msra.mxu0 0
    %1114 = vmatprep.subr.bf16.mxu0 0
    %1115 = vmatpush1.bf16.msra.mxu0 0
    %1116 = vmatprep.subr.bf16.mxu0 0
    %1117 = vmatpush1.bf16.msra.mxu0 0
    %1118 = vmatprep.subr.bf16.mxu0 0
    %1119 = vmatpush1.bf16.msra.mxu0 0
    %1120 = vmatprep.subr.bf16.mxu0 0
    %1121 = vmatpush1.bf16.msra.mxu0 0
    %1122 = vmatprep.subr.bf16.mxu0 0
    %1123 = vmatpush1.bf16.msra.mxu0 0
    %1124 = vmatprep.subr.bf16.mxu0 0
    %1125 = vmatpush1.bf16.msra.mxu0 0
    %1126 = vmatprep.mubr.bf16.mxu0 0
    %1127 = vmatmul.mubr.bf16.gmra.mrb[0].mxu0 %v1089
    %v1128 = vpop.f32.mrb[0].mxu0
    %v1129 = vadd.f32 0.0, %v1128
    %v1130 = vpop.f32.mrb[0].mxu0
    %v1131 = vpop.f32.mrb[0].mxu0
    %v1132 = vadd.f32 0.0, %v1131
    %v1133 = vpop.f32.mrb[0].mxu0
    %1134 = vmatprep.mubr.bf16.mxu0 0
    %1135 = vmatmul.mubr.bf16.gmra.mrb[0].mxu0 %v1092
    %v1136 = vpop.f32.mrb[0].mxu0
    %v1137 = vadd.f32 0.0, %v1136
    %v1138 = vpop.f32.mrb[0].mxu0
    %v1139 = vpop.f32.mrb[0].mxu0
    %v1140 = vadd.f32 0.0, %v1139
    %v1141 = vpop.f32.mrb[0].mxu0
    %1142 = vdwg.mxu0
    %v1143 = vadd.f32 %v1129, %v1132
    %v1144 = vadd.f32 %v1143, %v1137
    %v1145 = vadd.f32 %v1144, %v1140
    %v1146 = vrot.slane %v1145, 4
    %v1147 = vadd.f32 %v1145, %v1146
    %v1148 = vrot.slane %v1147, 2
    %v1149 = vadd.f32 %v1147, %v1148
    %v1150 = vrot.slane %v1149, 1
    %v1151 = vadd.f32 %v1149, %v1150
    %v1152 = vmul.f32 %v1151, 0.03125
    %v1153 = vsub.f32 %v1129, %v1152
    %v1154 = vsub.f32 %v1132, %v1152
    %v1155 = vsub.f32 %v1137, %v1152
    %v1156 = vsub.f32 %v1140, %v1152
    %v1157 = vmul.f32 %v1153, %v1153
    %v1158 = vmul.f32 %v1154, %v1154
    %v1159 = vmul.f32 %v1155, %v1155
    %v1160 = vmul.f32 %v1156, %v1156
    %v1161 = vadd.f32 %v1157, %v1158
    %v1162 = vadd.f32 %v1161, %v1159
    %v1163 = vadd.f32 %v1162, %v1160
    %v1164 = vrot.slane %v1163, 4
    %v1165 = vadd.f32 %v1163, %v1164
    %v1166 = vrot.slane %v1165, 2
    %v1167 = vadd.f32 %v1165, %v1166
    %v1168 = vrot.slane %v1167, 1
    %v1169 = vadd.f32 %v1167, %v1168
    %v1170 = vmul.f32 %v1169, 0.03125
    %v1171 = vadd.f32 %v1170, 1e-05
    %v1172 = vrsqrt.pop %v1171
    %v1173 = vmul.f32 %v974, %v1172
    %v1174 = vlaneseq
    %v1175 = vshrl.u32 %v1174, 7
    %v1176 = vsub.s32 0, %v1175
    %v1177 = vrot.slane %v1173, %v1176
    %v1178 = vmul.f32 %v1153, %v1177
    %v1179 = vmul.f32 %v1154, %v1177
    %v1180 = vmul.f32 %v1155, %v1177
    %v1181 = vmul.f32 %v1156, %v1177
    %v1182 = vlaneseq
    %v1183 = vshrl.u32 %v1182, 7
    %v1184 = vsub.s32 0, %v1183
    %v1185 = vrot.slane %v975, %v1184
    %v1186 = vadd.f32 %v1178, %v1185
    %v1187 = vadd.f32 %v1179, %v1185
    %v1188 = vadd.f32 %v1180, %v1185
    %v1189 = vadd.f32 %v1181, %v1185
    %v1190 = vmax.f32 %v1186, 0.0
    %v1191 = vmax.f32 %v1187, 0.0
    %v1192 = vmax.f32 %v1188, 0.0
    %v1193 = vmax.f32 %v1189, 0.0
    %v1194 = vpack.c.bf16 %v1191, %v1190
    %v1195 = vpack.c.bf16 %v1193, %v1192
    %v1196 = vlaneseq
    %v1197 = vshrl.u32 %v1196, 7
    %v1198 = vsub.s32 0, %v1197
    %v1199 = vrot.slane %v976, %v1198
    %1200 = vmatprep.subr.bf16.mxu0 0
    %1201 = vmatpush1.bf16.msra.mxu0 %v1025
    %1202 = vmatprep.subr.bf16.mxu0 0
    %1203 = vmatpush1.bf16.msra.mxu0 %v1026
    %1204 = vmatprep.subr.bf16.mxu0 0
    %1205 = vmatpush1.bf16.msra.mxu0 %v1027
    %1206 = vmatprep.subr.bf16.mxu0 0
    %1207 = vmatpush1.bf16.msra.mxu0 %v1028
    %1208 = vmatprep.subr.bf16.mxu0 0
    %1209 = vmatpush1.bf16.msra.mxu0 %v1029
    %1210 = vmatprep.subr.bf16.mxu0 0
    %1211 = vmatpush1.bf16.msra.mxu0 %v1030
    %1212 = vmatprep.subr.bf16.mxu0 0
    %1213 = vmatpush1.bf16.msra.mxu0 %v1031
    %1214 = vmatprep.subr.bf16.mxu0 0
    %1215 = vmatpush1.bf16.msra.mxu0 %v1032
    %1216 = vmatprep.subr.bf16.mxu0 0
    %1217 = vmatpush1.bf16.msra.mxu0 0
    %1218 = vmatprep.subr.bf16.mxu0 0
    %1219 = vmatpush1.bf16.msra.mxu0 0
    %1220 = vmatprep.subr.bf16.mxu0 0
    %1221 = vmatpush1.bf16.msra.mxu0 0
    %1222 = vmatprep.subr.bf16.mxu0 0
    %1223 = vmatpush1.bf16.msra.mxu0 0
    %1224 = vmatprep.subr.bf16.mxu0 0
    %1225 = vmatpush1.bf16.msra.mxu0 0
    %1226 = vmatprep.subr.bf16.mxu0 0
    %1227 = vmatpush1.bf16.msra.mxu0 0
    %1228 = vmatprep.subr.bf16.mxu0 0
    %1229 = vmatpush1.bf16.msra.mxu0 0
    %1230 = vmatprep.subr.bf16.mxu0 0
    %1231 = vmatpush1.bf16.msra.mxu0 0
    %1232 = vmatprep.mubr.bf16.mxu0 0
    %1233 = vmatmul.mubr.bf16.gmra.mrb[0].mxu0 %v1194
    %v1234 = vpop.f32.mrb[0].mxu0
    %v1235 = vadd.f32 %v1199, %v1234
    %v1236 = vpop.f32.mrb[0].mxu0
    %v1237 = vpop.f32.mrb[0].mxu0
    %v1238 = vadd.f32 %v1199, %v1237
    %v1239 = vpop.f32.mrb[0].mxu0
    %1240 = vmatprep.mubr.bf16.mxu0 0
    %1241 = vmatmul.mubr.bf16.gmra.mrb[0].mxu0 %v1195
    %v1242 = vpop.f32.mrb[0].mxu0
    %v1243 = vadd.f32 %v1199, %v1242
    %v1244 = vpop.f32.mrb[0].mxu0
    %v1245 = vpop.f32.mrb[0].mxu0
    %v1246 = vadd.f32 %v1199, %v1245
    %v1247 = vpop.f32.mrb[0].mxu0
    %1248 = vdwg.mxu0
    %v1249 = vpack.c.bf16 %v1238, %v1235
    %v1250 = vpack.c.bf16 %v1246, %v1243
    %1251 = vmatprep.subr.bf16.mxu0 0
    %1252 = vmatpush1.bf16.msra.mxu0 %v1249
    %1253 = vmatprep.subr.bf16.mxu0 0
    %1254 = vmatpush1.bf16.msra.mxu0 %v1250
    %1255 = vmatprep.subr.bf16.mxu0 0
    %1256 = vmatpush1.bf16.msra.mxu0 0
    %1257 = vmatprep.subr.bf16.mxu0 0
    %1258 = vmatpush1.bf16.msra.mxu0 0
    %1259 = vmatprep.subr.bf16.mxu0 0
    %1260 = vmatpush1.bf16.msra.mxu0 0
    %1261 = vmatprep.subr.bf16.mxu0 0
    %1262 = vmatpush1.bf16.msra.mxu0 0
    %1263 = vmatprep.subr.bf16.mxu0 0
    %1264 = vmatpush1.bf16.msra.mxu0 0
    %1265 = vmatprep.subr.bf16.mxu0 0
    %1266 = vmatpush1.bf16.msra.mxu0 0
    %1267 = vmatprep.subr.bf16.mxu0 0
    %1268 = vmatpush1.bf16.msra.mxu0 0
    %1269 = vmatprep.subr.bf16.mxu0 0
    %1270 = vmatpush1.bf16.msra.mxu0 0
    %1271 = vmatprep.subr.bf16.mxu0 0
    %1272 = vmatpush1.bf16.msra.mxu0 0
    %1273 = vmatprep.subr.bf16.mxu0 0
    %1274 = vmatpush1.bf16.msra.mxu0 0
    %1275 = vmatprep.subr.bf16.mxu0 0
    %1276 = vmatpush1.bf16.msra.mxu0 0
    %1277 = vmatprep.subr.bf16.mxu0 0
    %1278 = vmatpush1.bf16.msra.mxu0 0
    %1279 = vmatprep.subr.bf16.mxu0 0
    %1280 = vmatpush1.bf16.msra.mxu0 0
    %1281 = vmatprep.subr.bf16.mxu0 0
    %1282 = vmatpush1.bf16.msra.mxu0 0
    %1283 = vmatprep.mubr.bf16.mxu0 0
    %1284 = vmatmul.mubr.bf16.gmra.mrb[0].mxu0 %v1089
    %v1285 = vpop.f32.mrb[0].mxu0
    %v1286 = vadd.f32 0.0, %v1285
    %v1287 = vpop.f32.mrb[0].mxu0
    %v1288 = vpop.f32.mrb[0].mxu0
    %v1289 = vadd.f32 0.0, %v1288
    %v1290 = vpop.f32.mrb[0].mxu0
    %1291 = vmatprep.mubr.bf16.mxu0 0
    %1292 = vmatmul.mubr.bf16.gmra.mrb[0].mxu0 %v1092
    %v1293 = vpop.f32.mrb[0].mxu0
    %v1294 = vadd.f32 0.0, %v1293
    %v1295 = vpop.f32.mrb[0].mxu0
    %v1296 = vpop.f32.mrb[0].mxu0
    %v1297 = vadd.f32 0.0, %v1296
    %v1298 = vpop.f32.mrb[0].mxu0
    %1299 = vdwg.mxu0
    %v1300 = vadd.f32 %v1286, %v1289
    %v1301 = vadd.f32 %v1300, %v1294
    %v1302 = vadd.f32 %v1301, %v1297
    %v1303 = vrot.slane %v1302, 4
    %v1304 = vadd.f32 %v1302, %v1303
    %v1305 = vrot.slane %v1304, 2
    %v1306 = vadd.f32 %v1304, %v1305
    %v1307 = vrot.slane %v1306, 1
    %v1308 = vadd.f32 %v1306, %v1307
    %v1309 = vmul.f32 %v1308, 0.03125
    %v1310 = vsub.f32 %v1286, %v1309
    %v1311 = vsub.f32 %v1289, %v1309
    %v1312 = vsub.f32 %v1294, %v1309
    %v1313 = vsub.f32 %v1297, %v1309
    %v1314 = vmul.f32 %v1310, %v1310
    %v1315 = vmul.f32 %v1311, %v1311
    %v1316 = vmul.f32 %v1312, %v1312
    %v1317 = vmul.f32 %v1313, %v1313
    %v1318 = vadd.f32 %v1314, %v1315
    %v1319 = vadd.f32 %v1318, %v1316
    %v1320 = vadd.f32 %v1319, %v1317
    %v1321 = vrot.slane %v1320, 4
    %v1322 = vadd.f32 %v1320, %v1321
    %v1323 = vrot.slane %v1322, 2
    %v1324 = vadd.f32 %v1322, %v1323
    %v1325 = vrot.slane %v1324, 1
    %v1326 = vadd.f32 %v1324, %v1325
    %v1327 = vmul.f32 %v1326, 0.03125
    %v1328 = vadd.f32 %v1327, 1e-05
    %v1329 = vrsqrt.pop %v1328
    %v1330 = vmul.f32 %v977, %v1329
    %v1331 = vlaneseq
    %v1332 = vshrl.u32 %v1331, 7
    %v1333 = vsub.s32 0, %v1332
    %v1334 = vrot.slane %v1330, %v1333
    %v1335 = vmul.f32 %v1310, %v1334
    %v1336 = vmul.f32 %v1311, %v1334
    %v1337 = vmul.f32 %v1312, %v1334
    %v1338 = vmul.f32 %v1313, %v1334
    %v1339 = vlaneseq
    %v1340 = vshrl.u32 %v1339, 7
    %v1341 = vsub.s32 0, %v1340
    %v1342 = vrot.slane %v978, %v1341
    %v1343 = vadd.f32 %v1335, %v1342
    %v1344 = vadd.f32 %v1336, %v1342
    %v1345 = vadd.f32 %v1337, %v1342
    %v1346 = vadd.f32 %v1338, %v1342
    %1347 = vst [vmem:[#allocation10] sm:$0xff] %v1343
    %1348 = vst [vmem:[#allocation10 + $0x8] sm:$0xff] %v1344
    %1349 = vst [vmem:[#allocation10 + $0x10] sm:$0xff] %v1345
    %1350 = vst [vmem:[#allocation10 + $0x18] sm:$0xff] %v1346
    // Predicated region
    $region38: #{tpu_custom_call.1} parent=1 // pred_check
      _
    $region39: #{tpu_custom_call.1} parent=1 // pred_check_branch
      %1352 = sbr.rel (0) target = $region41
    $region40: #{tpu_custom_call.1} parent=1 // pred_region
      %s1354 = ssub.s32 512, 512
      %1355 = vsyncadd [#allocation4], %s1354
      %s1356 = sshll.u32 [#allocation10], 4
      %s1357 = int_to_ptr.vmem [resolvable:$true] %s1356
      %1362 = dma.vmem_to_hbm [thread:$0]  %s1357, 512, %s5, [#allocation4], 128, 128, 8
    $region41: #{tpu_custom_call.1} parent=1 // pred_fallthru
      _
    // Predicated region
    $region42: #{tpu_custom_call.1} parent=1 // pred_check
      _
    $region43: #{tpu_custom_call.1} parent=1 // pred_check_branch
      %1364 = sbr.rel (0) target = $region45
    $region44: #{tpu_custom_call.1} parent=1 // pred_region
      %1365 = dma.done [#allocation4], 512
    $region45: #{tpu_custom_call.1} parent=1 // pred_fallthru
      _
    %1366 = vsyncpa [#allocation3], 1
    %1367 = vsyncpa [#allocation6], 1
    %1368 = vsyncpa [#allocation9], 1
    %1369 = vsyncpa [#allocation4], 1

</llo_original>
